<compile_context>
chip_gen: v7x
topology: tpu7x:2x2x1
jax: 0.10.0
libtpu: 0.0.40
codegen_flags: <defaults>
</compile_context>

<pallas_src>
import functools
from typing import Dict, Iterable

import jax
import jax.numpy as jnp
from jax import lax
from jax.experimental import pallas as pl
from jax.experimental.pallas import tpu as pltpu


_TAPS = [(-1, -1), (-1, 0), (-1, 1),
         (0, -1), (0, 0), (0, 1),
         (1, -1), (1, 0), (1, 1)]


# ----------------------------------------------------------------------------
# Fused kernel: conv1(3x3, SAME) + bias -> ReLU -> conv2(3x3, SAME) + bias.
# Planar channel-major layout, batch folded into the lane axis.
#   x_ref     : (Cin, N*H*W) f32
#   w1_ref    : (C1, 9*Cin)  f32   packed tap-major, channel-minor
#   b1_ref    : (C1, 1)      f32
#   w2_ref    : (C2, 9*C1)   f32
#   b2_ref    : (C2, 1)      f32
#   hook1_ref : (C1, N*H*W)  pre-ReLU conv1 output (hook capture)
#   hook2_ref : (C2, N*H*W)  pre-ReLU conv2 output (hook capture)
# ----------------------------------------------------------------------------
def _fused_feature_kernel(x_ref, w1_ref, b1_ref, w2_ref, b2_ref,
                          hook1_ref, hook2_ref, *, H, W):
    nhw = x_ref.shape[1]

    # Per-image row/col of every lane; built once for the whole fused body.
    flat = lax.broadcasted_iota(jnp.int32, (1, nhw), 1)
    if (W & (W - 1)) == 0:
        col = flat & (W - 1)
        pos = flat >> (W.bit_length() - 1)
    else:
        col = flat % W
        pos = flat // W
    if (H & (H - 1)) == 0:
        row = pos & (H - 1)
    else:
        row = pos % H

    # One {0,1} float mask plane per tap (None for the centre tap).  Keyed on
    # per-image row/col so rolls never leak across image boundaries.
    masks = []
    for dy, dx in _TAPS:
        conds = []
        if dy == -1:
            conds.append(row >= 1)
        if dy == 1:
            conds.append(row <= H - 2)
        if dx == -1:
            conds.append(col >= 1)
        if dx == 1:
            conds.append(col <= W - 2)
        if conds:
            valid = conds[0]
            for c in conds[1:]:
                valid = valid & c
            masks.append(valid.astype(jnp.float32))
        else:
            masks.append(None)

    def conv3x3(inp, w2d, b_col):
        # inp: (Cin_l, nhw); w2d: (Cout_l, 9*Cin_l); b_col: (Cout_l, 1)
        planes = []
        for (dy, dx), m in zip(_TAPS, masks):
            s = dy * W + dx
            shifted = pltpu.roll(inp, (-s) % nhw, axis=1) if s != 0 else inp
            if m is not None:
                shifted = shifted * m          # single vmul per tap
            planes.append(shifted)
        x9 = jnp.concatenate(planes, axis=0)   # (9*Cin_l, nhw) im2col tile
        # One MXU matmul instead of 9*Cin rank-1 VPU broadcast-FMAs.
        acc = jnp.dot(w2d, x9,
                      precision=jax.lax.Precision.HIGHEST,
                      preferred_element_type=jnp.float32)
        return acc + b_col

    acc1 = conv3x3(x_ref[...], w1_ref[...], b1_ref[...])
    hook1_ref[...] = acc1.astype(hook1_ref.dtype)          # pre-ReLU capture
    act1 = jnp.maximum(acc1, 0.0)                           # stays in VMEM/vregs
    acc2 = conv3x3(act1, w2_ref[...], b2_ref[...])
    hook2_ref[...] = acc2.astype(hook2_ref.dtype)           # pre-ReLU capture
    # Post-ReLU output of conv2 is intentionally NOT emitted (dead in the
    # FeatureExtractor forward, which discards the model output).


def fused_two_layer_features(x_planar, w1, b1, w2, b2, H, W):
    """x_planar: (Cin, N*H*W) f32; w*: (Cout, 9*Cin); b*: (Cout, 1).
    Returns (hook1, hook2) pre-ReLU conv outputs, planar (Cout, N*H*W) f32."""
    cin, nhw = x_planar.shape
    c1 = w1.shape[0]
    c2 = w2.shape[0]
    assert nhw == (x_planar.size // cin)
    # Lane-dense requirement for the flat-spatial layout.
    # TODO(synk): for N*H*W not a multiple of 128, pad the flat axis and use a
    # masked pltpu.store for the tail instead of shrinking the lane width.
    assert nhw % 128 == 0, "flat (batch*spatial) axis must be a multiple of 128"

    kernel = functools.partial(_fused_feature_kernel, H=H, W=W)

    return pl.pallas_call(
        kernel,
        out_shape=(
            jax.ShapeDtypeStruct((c1, nhw), jnp.float32),   # hook: conv1 pre-ReLU
            jax.ShapeDtypeStruct((c2, nhw), jnp.float32),   # hook: conv2 pre-ReLU
        ),
        grid=(1,),                                          # single step; 1-TC friendly
        in_specs=[
            pl.BlockSpec((cin, nhw), lambda i: (0, 0)),
            pl.BlockSpec(w1.shape, lambda i: (0, 0)),
            pl.BlockSpec(b1.shape, lambda i: (0, 0)),
            pl.BlockSpec(w2.shape, lambda i: (0, 0)),
            pl.BlockSpec(b2.shape, lambda i: (0, 0)),
        ],
        out_specs=(
            pl.BlockSpec((c1, nhw), lambda i: (0, 0)),
            pl.BlockSpec((c2, nhw), lambda i: (0, 0)),
        ),
    )(x_planar, w1, b1, w2, b2)


# ----------------------------------------------------------------------------
# Small deterministic CNN "model" whose named layers can be hooked.
# ----------------------------------------------------------------------------
def _pack_conv_weight(w_hwoi):
    """(kh, kw, Cout, Cin) -> lane-dense (Cout, kh*kw*Cin), tap-major."""
    kh, kw, cout, cin = w_hwoi.shape
    return jnp.transpose(w_hwoi, (2, 0, 1, 3)).reshape(cout, kh * kw * cin)


class TinyCNN:
    def __init__(self, in_ch: int, hidden_ch: int, key):
        k1, k2, k3, k4 = jax.random.split(key, 4)
        s1 = (1.0 / (in_ch * 9.0)) ** 0.5
        s2 = (1.0 / (hidden_ch * 9.0)) ** 0.5
        # Canonical (kh, kw, Cout, Cin) weights (used only by the reference check).
        self.params = {
            "conv1": {
                "w": jax.random.uniform(k1, (3, 3, hidden_ch, in_ch),
                                        jnp.float32, -s1, s1),
                "b": jax.random.uniform(k2, (hidden_ch, 1), jnp.float32, -s1, s1),
            },
            "conv2": {
                "w": jax.random.uniform(k3, (3, 3, hidden_ch, hidden_ch),
                                        jnp.float32, -s2, s2),
                "b": jax.random.uniform(k4, (hidden_ch, 1), jnp.float32, -s2, s2),
            },
        }
        # Kernel-friendly packed layout (one lane-dense weight tile per conv).
        self.packed = {
            name: {"w": _pack_conv_weight(p["w"]), "b": p["b"]}
            for name, p in self.params.items()
        }


# ----------------------------------------------------------------------------
# FeatureExtractor equivalent: returns dict of hooked layer outputs in NCHW.
# ----------------------------------------------------------------------------
class FeatureExtractor:
    def __init__(self, model: TinyCNN, layers: Iterable[str]):
        self.model = model
        self.layers = list(layers)
        self._forward = jax.jit(self._run)

    def _run(self, x_nchw) -> Dict[str, jnp.ndarray]:
        N, C, H, W = x_nchw.shape
        # Channel-major planar layout with batch folded into lanes.  This is a
        # tiny (few-KiB) XLA transpose outside the kernel; no NCHW<->NHWC
        # shuffling in the hot path.
        x_planar = jnp.transpose(x_nchw.reshape(N, C, H * W),
                                 (1, 0, 2)).reshape(C, N * H * W)

        p1 = self.model.packed["conv1"]
        p2 = self.model.packed["conv2"]
        hook1, hook2 = fused_two_layer_features(
            x_planar, p1["w"], p1["b"], p2["w"], p2["b"], H, W)

        hooks = {"conv1": hook1, "conv2": hook2}
        out = {}
        for name in self.layers:
            h = hooks[name]                                  # (Cout, N*H*W)
            out[name] = jnp.transpose(h.reshape(-1, N, H, W), (1, 0, 2, 3))
        return out

    def __call__(self, x_nchw) -> Dict[str, jnp.ndarray]:
        return self._forward(x_nchw)


# ----------------------------------------------------------------------------
# Reference conv (plain JAX / XLA) for the correctness sanity check.
# ----------------------------------------------------------------------------
def _ref_conv_nchw(x_nchw, w_hwoi, b_col):
    w_oihw = jnp.transpose(w_hwoi, (2, 3, 0, 1))             # (Cout, Cin, kh, kw)
    y = lax.conv_general_dilated(
        x_nchw, w_oihw, window_strides=(1, 1), padding="SAME",
        dimension_numbers=("NCHW", "OIHW", "NCHW"),
        precision=lax.Precision.HIGHEST)
    return y + b_col.reshape(1, -1, 1, 1)


if __name__ == "__main__":
    key = jax.random.PRNGKey(0)
    kx, kp = jax.random.split(key)

    N, C, H, W = 2, 4, 16, 16
    HIDDEN = 8
    x = jax.random.normal(kx, (N, C, H, W), jnp.float32)     # NCHW like PyTorch

    model = TinyCNN(in_ch=C, hidden_ch=HIDDEN, key=kp)
    extractor = FeatureExtractor(model, layers=["conv1", "conv2"])

    feats = jax.block_until_ready(extractor(x))

    # Sanity check against a pure-JAX reference of the same forward pass.
    ref1 = _ref_conv_nchw(x, model.params["conv1"]["w"], model.params["conv1"]["b"])
    ref2 = _ref_conv_nchw(jnp.maximum(ref1, 0.0),
                          model.params["conv2"]["w"], model.params["conv2"]["b"])
    assert feats["conv1"].shape == (N, HIDDEN, H, W)
    assert feats["conv2"].shape == (N, HIDDEN, H, W)
    assert jnp.allclose(feats["conv1"], ref1, atol=1e-3, rtol=1e-3)
    assert jnp.allclose(feats["conv2"], ref2, atol=1e-3, rtol=1e-3)

    print("KERNEL_OK")
</pallas_src>

<mosaic_0001>
module attributes {stable_mosaic.version = 11 : i64} {
  func.func @_fused_feature_kernel(%arg0: i32, %arg1: memref<4x512xf32, #tpu.memory_space<vmem>>, %arg2: memref<8x36xf32, #tpu.memory_space<vmem>>, %arg3: memref<8x1xf32, #tpu.memory_space<vmem>>, %arg4: memref<8x72xf32, #tpu.memory_space<vmem>>, %arg5: memref<8x1xf32, #tpu.memory_space<vmem>>, %arg6: memref<8x512xf32, #tpu.memory_space<vmem>>, %arg7: memref<8x512xf32, #tpu.memory_space<vmem>>) attributes {dimension_semantics = [#tpu.dimension_semantics<arbitrary>], iteration_bounds = array<i64: 1>, scalar_prefetch = 0 : i64, scratch_operands = 0 : i64, tpu.core_type = #tpu.core_type<tc>, window_params = [{pipeline_mode = #tpu.pipeline_mode<synchronous>, transform_indices = @transform_0, window_bounds = array<i64: 4, 512>}, {pipeline_mode = #tpu.pipeline_mode<synchronous>, transform_indices = @transform_1, window_bounds = array<i64: 8, 36>}, {pipeline_mode = #tpu.pipeline_mode<synchronous>, transform_indices = @transform_2, window_bounds = array<i64: 8, 1>}, {pipeline_mode = #tpu.pipeline_mode<synchronous>, transform_indices = @transform_3, window_bounds = array<i64: 8, 72>}, {pipeline_mode = #tpu.pipeline_mode<synchronous>, transform_indices = @transform_4, window_bounds = array<i64: 8, 1>}, {pipeline_mode = #tpu.pipeline_mode<synchronous>, transform_indices = @transform_5, window_bounds = array<i64: 8, 512>}, {pipeline_mode = #tpu.pipeline_mode<synchronous>, transform_indices = @transform_6, window_bounds = array<i64: 8, 512>}]} {
    %0 = tpu.iota {dimensions = array<i32: 1>} : vector<1x512xi32>
    %c15_i32 = arith.constant 15 : i32
    %1 = vector.broadcast %c15_i32 : i32 to vector<1x512xi32>
    %2 = arith.andi %0, %1 : vector<1x512xi32>
    %c4_i32 = arith.constant 4 : i32
    %3 = vector.broadcast %c4_i32 : i32 to vector<1x512xi32>
    %4 = arith.shrsi %0, %3 : vector<1x512xi32>
    %c15_i32_0 = arith.constant 15 : i32
    %5 = vector.broadcast %c15_i32_0 : i32 to vector<1x512xi32>
    %6 = arith.andi %4, %5 : vector<1x512xi32>
    %c1_i32 = arith.constant 1 : i32
    %7 = vector.broadcast %c1_i32 : i32 to vector<1x512xi32>
    %8 = arith.cmpi sge, %6, %7 : vector<1x512xi32>
    %c1_i32_1 = arith.constant 1 : i32
    %9 = vector.broadcast %c1_i32_1 : i32 to vector<1x512xi32>
    %10 = arith.cmpi sge, %2, %9 : vector<1x512xi32>
    %11 = arith.andi %8, %10 : vector<1x512xi1>
    %12 = arith.extui %11 : vector<1x512xi1> to vector<1x512xi32>
    %13 = arith.sitofp %12 : vector<1x512xi32> to vector<1x512xf32>
    %c1_i32_2 = arith.constant 1 : i32
    %14 = vector.broadcast %c1_i32_2 : i32 to vector<1x512xi32>
    %15 = arith.cmpi sge, %6, %14 : vector<1x512xi32>
    %16 = arith.extui %15 : vector<1x512xi1> to vector<1x512xi32>
    %17 = arith.sitofp %16 : vector<1x512xi32> to vector<1x512xf32>
    %c1_i32_3 = arith.constant 1 : i32
    %18 = vector.broadcast %c1_i32_3 : i32 to vector<1x512xi32>
    %19 = arith.cmpi sge, %6, %18 : vector<1x512xi32>
    %c14_i32 = arith.constant 14 : i32
    %20 = vector.broadcast %c14_i32 : i32 to vector<1x512xi32>
    %21 = arith.cmpi sle, %2, %20 : vector<1x512xi32>
    %22 = arith.andi %19, %21 : vector<1x512xi1>
    %23 = arith.extui %22 : vector<1x512xi1> to vector<1x512xi32>
    %24 = arith.sitofp %23 : vector<1x512xi32> to vector<1x512xf32>
    %c1_i32_4 = arith.constant 1 : i32
    %25 = vector.broadcast %c1_i32_4 : i32 to vector<1x512xi32>
    %26 = arith.cmpi sge, %2, %25 : vector<1x512xi32>
    %27 = arith.extui %26 : vector<1x512xi1> to vector<1x512xi32>
    %28 = arith.sitofp %27 : vector<1x512xi32> to vector<1x512xf32>
    %c14_i32_5 = arith.constant 14 : i32
    %29 = vector.broadcast %c14_i32_5 : i32 to vector<1x512xi32>
    %30 = arith.cmpi sle, %2, %29 : vector<1x512xi32>
    %31 = arith.extui %30 : vector<1x512xi1> to vector<1x512xi32>
    %32 = arith.sitofp %31 : vector<1x512xi32> to vector<1x512xf32>
    %c14_i32_6 = arith.constant 14 : i32
    %33 = vector.broadcast %c14_i32_6 : i32 to vector<1x512xi32>
    %34 = arith.cmpi sle, %6, %33 : vector<1x512xi32>
    %c1_i32_7 = arith.constant 1 : i32
    %35 = vector.broadcast %c1_i32_7 : i32 to vector<1x512xi32>
    %36 = arith.cmpi sge, %2, %35 : vector<1x512xi32>
    %37 = arith.andi %34, %36 : vector<1x512xi1>
    %38 = arith.extui %37 : vector<1x512xi1> to vector<1x512xi32>
    %39 = arith.sitofp %38 : vector<1x512xi32> to vector<1x512xf32>
    %c14_i32_8 = arith.constant 14 : i32
    %40 = vector.broadcast %c14_i32_8 : i32 to vector<1x512xi32>
    %41 = arith.cmpi sle, %6, %40 : vector<1x512xi32>
    %42 = arith.extui %41 : vector<1x512xi1> to vector<1x512xi32>
    %43 = arith.sitofp %42 : vector<1x512xi32> to vector<1x512xf32>
    %c14_i32_9 = arith.constant 14 : i32
    %44 = vector.broadcast %c14_i32_9 : i32 to vector<1x512xi32>
    %45 = arith.cmpi sle, %6, %44 : vector<1x512xi32>
    %c14_i32_10 = arith.constant 14 : i32
    %46 = vector.broadcast %c14_i32_10 : i32 to vector<1x512xi32>
    %47 = arith.cmpi sle, %2, %46 : vector<1x512xi32>
    %48 = arith.andi %45, %47 : vector<1x512xi1>
    %49 = arith.extui %48 : vector<1x512xi1> to vector<1x512xi32>
    %50 = arith.sitofp %49 : vector<1x512xi32> to vector<1x512xf32>
    %c0 = arith.constant 0 : index
    %c0_11 = arith.constant 0 : index
    %51 = vector.load %arg1[%c0, %c0_11] : memref<4x512xf32, #tpu.memory_space<vmem>>, vector<4x512xf32>
    %c0_12 = arith.constant 0 : index
    %c0_13 = arith.constant 0 : index
    %52 = vector.load %arg2[%c0_12, %c0_13] : memref<8x36xf32, #tpu.memory_space<vmem>>, vector<8x36xf32>
    %c0_14 = arith.constant 0 : index
    %c0_15 = arith.constant 0 : index
    %53 = vector.load %arg3[%c0_14, %c0_15] : memref<8x1xf32, #tpu.memory_space<vmem>>, vector<8x1xf32>
    %c17_i32 = arith.constant 17 : i32
    %54 = tpu.dynamic_rotate %51 by %c17_i32 dim 1 : vector<4x512xf32>, i32 -> vector<4x512xf32>
    %55 = vector.broadcast %13 : vector<1x512xf32> to vector<4x512xf32>
    %56 = arith.mulf %54, %55 : vector<4x512xf32>
    %c16_i32 = arith.constant 16 : i32
    %57 = tpu.dynamic_rotate %51 by %c16_i32 dim 1 : vector<4x512xf32>, i32 -> vector<4x512xf32>
    %58 = vector.broadcast %17 : vector<1x512xf32> to vector<4x512xf32>
    %59 = arith.mulf %57, %58 : vector<4x512xf32>
    %c15_i32_16 = arith.constant 15 : i32
    %60 = tpu.dynamic_rotate %51 by %c15_i32_16 dim 1 : vector<4x512xf32>, i32 -> vector<4x512xf32>
    %61 = vector.broadcast %24 : vector<1x512xf32> to vector<4x512xf32>
    %62 = arith.mulf %60, %61 : vector<4x512xf32>
    %c1_i32_17 = arith.constant 1 : i32
    %63 = tpu.dynamic_rotate %51 by %c1_i32_17 dim 1 : vector<4x512xf32>, i32 -> vector<4x512xf32>
    %64 = vector.broadcast %28 : vector<1x512xf32> to vector<4x512xf32>
    %65 = arith.mulf %63, %64 : vector<4x512xf32>
    %c511_i32 = arith.constant 511 : i32
    %66 = tpu.dynamic_rotate %51 by %c511_i32 dim 1 : vector<4x512xf32>, i32 -> vector<4x512xf32>
    %67 = vector.broadcast %32 : vector<1x512xf32> to vector<4x512xf32>
    %68 = arith.mulf %66, %67 : vector<4x512xf32>
    %c497_i32 = arith.constant 497 : i32
    %69 = tpu.dynamic_rotate %51 by %c497_i32 dim 1 : vector<4x512xf32>, i32 -> vector<4x512xf32>
    %70 = vector.broadcast %39 : vector<1x512xf32> to vector<4x512xf32>
    %71 = arith.mulf %69, %70 : vector<4x512xf32>
    %c496_i32 = arith.constant 496 : i32
    %72 = tpu.dynamic_rotate %51 by %c496_i32 dim 1 : vector<4x512xf32>, i32 -> vector<4x512xf32>
    %73 = vector.broadcast %43 : vector<1x512xf32> to vector<4x512xf32>
    %74 = arith.mulf %72, %73 : vector<4x512xf32>
    %c495_i32 = arith.constant 495 : i32
    %75 = tpu.dynamic_rotate %51 by %c495_i32 dim 1 : vector<4x512xf32>, i32 -> vector<4x512xf32>
    %76 = vector.broadcast %50 : vector<1x512xf32> to vector<4x512xf32>
    %77 = arith.mulf %75, %76 : vector<4x512xf32>
    %78 = tpu.concatenate %56, %59, %62, %65, %51, %68, %71, %74, %77 in 0 : vector<4x512xf32>, vector<4x512xf32>, vector<4x512xf32>, vector<4x512xf32>, vector<4x512xf32>, vector<4x512xf32>, vector<4x512xf32>, vector<4x512xf32>, vector<4x512xf32> -> vector<36x512xf32>
    %cst = arith.constant dense<0.000000e+00> : vector<8x512xf32>
    %79 = tpu.matmul %52, %78, %cst {dimension_numbers = #tpu.dot_dimension_numbers<[1], [0], [0], [1], [0, 0, 1, 1], [], []>, precision = #tpu.contract_precision<fp32>} : vector<8x36xf32>, vector<36x512xf32>, vector<8x512xf32> -> vector<8x512xf32>
    %80 = vector.broadcast %53 : vector<8x1xf32> to vector<8x512xf32>
    %81 = arith.addf %79, %80 : vector<8x512xf32>
    %c0_18 = arith.constant 0 : index
    %c0_19 = arith.constant 0 : index
    %82 = vector.load %arg6[%c0_18, %c0_19] : memref<8x512xf32, #tpu.memory_space<vmem>>, vector<8x512xf32>
    tpu.vector_store %arg6[%c0_18, %c0_19], %81 {strides = array<i32>} : memref<8x512xf32, #tpu.memory_space<vmem>>, vector<8x512xf32>,
    %cst_20 = arith.constant 0.000000e+00 : f32
    %83 = vector.broadcast %cst_20 : f32 to vector<8x512xf32>
    %84 = arith.maximumf %81, %83 : vector<8x512xf32>
    %c0_21 = arith.constant 0 : index
    %c0_22 = arith.constant 0 : index
    %85 = vector.load %arg4[%c0_21, %c0_22] : memref<8x72xf32, #tpu.memory_space<vmem>>, vector<8x72xf32>
    %c0_23 = arith.constant 0 : index
    %c0_24 = arith.constant 0 : index
    %86 = vector.load %arg5[%c0_23, %c0_24] : memref<8x1xf32, #tpu.memory_space<vmem>>, vector<8x1xf32>
    %c17_i32_25 = arith.constant 17 : i32
    %87 = tpu.dynamic_rotate %84 by %c17_i32_25 dim 1 : vector<8x512xf32>, i32 -> vector<8x512xf32>
    %88 = vector.broadcast %13 : vector<1x512xf32> to vector<8x512xf32>
    %89 = arith.mulf %87, %88 : vector<8x512xf32>
    %c16_i32_26 = arith.constant 16 : i32
    %90 = tpu.dynamic_rotate %84 by %c16_i32_26 dim 1 : vector<8x512xf32>, i32 -> vector<8x512xf32>
    %91 = vector.broadcast %17 : vector<1x512xf32> to vector<8x512xf32>
    %92 = arith.mulf %90, %91 : vector<8x512xf32>
    %c15_i32_27 = arith.constant 15 : i32
    %93 = tpu.dynamic_rotate %84 by %c15_i32_27 dim 1 : vector<8x512xf32>, i32 -> vector<8x512xf32>
    %94 = vector.broadcast %24 : vector<1x512xf32> to vector<8x512xf32>
    %95 = arith.mulf %93, %94 : vector<8x512xf32>
    %c1_i32_28 = arith.constant 1 : i32
    %96 = tpu.dynamic_rotate %84 by %c1_i32_28 dim 1 : vector<8x512xf32>, i32 -> vector<8x512xf32>
    %97 = vector.broadcast %28 : vector<1x512xf32> to vector<8x512xf32>
    %98 = arith.mulf %96, %97 : vector<8x512xf32>
    %c511_i32_29 = arith.constant 511 : i32
    %99 = tpu.dynamic_rotate %84 by %c511_i32_29 dim 1 : vector<8x512xf32>, i32 -> vector<8x512xf32>
    %100 = vector.broadcast %32 : vector<1x512xf32> to vector<8x512xf32>
    %101 = arith.mulf %99, %100 : vector<8x512xf32>
    %c497_i32_30 = arith.constant 497 : i32
    %102 = tpu.dynamic_rotate %84 by %c497_i32_30 dim 1 : vector<8x512xf32>, i32 -> vector<8x512xf32>
    %103 = vector.broadcast %39 : vector<1x512xf32> to vector<8x512xf32>
    %104 = arith.mulf %102, %103 : vector<8x512xf32>
    %c496_i32_31 = arith.constant 496 : i32
    %105 = tpu.dynamic_rotate %84 by %c496_i32_31 dim 1 : vector<8x512xf32>, i32 -> vector<8x512xf32>
    %106 = vector.broadcast %43 : vector<1x512xf32> to vector<8x512xf32>
    %107 = arith.mulf %105, %106 : vector<8x512xf32>
    %c495_i32_32 = arith.constant 495 : i32
    %108 = tpu.dynamic_rotate %84 by %c495_i32_32 dim 1 : vector<8x512xf32>, i32 -> vector<8x512xf32>
    %109 = vector.broadcast %50 : vector<1x512xf32> to vector<8x512xf32>
    %110 = arith.mulf %108, %109 : vector<8x512xf32>
    %111 = tpu.concatenate %89, %92, %95, %98, %84, %101, %104, %107, %110 in 0 : vector<8x512xf32>, vector<8x512xf32>, vector<8x512xf32>, vector<8x512xf32>, vector<8x512xf32>, vector<8x512xf32>, vector<8x512xf32>, vector<8x512xf32>, vector<8x512xf32> -> vector<72x512xf32>
    %cst_33 = arith.constant dense<0.000000e+00> : vector<8x512xf32>
    %112 = tpu.matmul %85, %111, %cst_33 {dimension_numbers = #tpu.dot_dimension_numbers<[1], [0], [0], [1], [0, 0, 1, 1], [], []>, precision = #tpu.contract_precision<fp32>} : vector<8x72xf32>, vector<72x512xf32>, vector<8x512xf32> -> vector<8x512xf32>
    %113 = vector.broadcast %86 : vector<8x1xf32> to vector<8x512xf32>
    %114 = arith.addf %112, %113 : vector<8x512xf32>
    %c0_34 = arith.constant 0 : index
    %c0_35 = arith.constant 0 : index
    %115 = vector.load %arg7[%c0_34, %c0_35] : memref<8x512xf32, #tpu.memory_space<vmem>>, vector<8x512xf32>
    tpu.vector_store %arg7[%c0_34, %c0_35], %114 {strides = array<i32>} : memref<8x512xf32, #tpu.memory_space<vmem>>, vector<8x512xf32>,
    return
  }
  func.func @transform_0(%arg0: i32) -> (i32, i32) {
    %c0_i32 = arith.constant 0 : i32
    %c0_i32_0 = arith.constant 0 : i32
    %c0_i32_1 = arith.constant 0 : i32
    return %c0_i32, %c0_i32_0 : i32, i32
  }
  func.func @transform_1(%arg0: i32) -> (i32, i32) {
    %c0_i32 = arith.constant 0 : i32
    %c0_i32_0 = arith.constant 0 : i32
    %c0_i32_1 = arith.constant 0 : i32
    return %c0_i32, %c0_i32_0 : i32, i32
  }
  func.func @transform_2(%arg0: i32) -> (i32, i32) {
    %c0_i32 = arith.constant 0 : i32
    %c0_i32_0 = arith.constant 0 : i32
    %c0_i32_1 = arith.constant 0 : i32
    return %c0_i32, %c0_i32_0 : i32, i32
  }
  func.func @transform_3(%arg0: i32) -> (i32, i32) {
    %c0_i32 = arith.constant 0 : i32
    %c0_i32_0 = arith.constant 0 : i32
    %c0_i32_1 = arith.constant 0 : i32
    return %c0_i32, %c0_i32_0 : i32, i32
  }
  func.func @transform_4(%arg0: i32) -> (i32, i32) {
    %c0_i32 = arith.constant 0 : i32
    %c0_i32_0 = arith.constant 0 : i32
    %c0_i32_1 = arith.constant 0 : i32
    return %c0_i32, %c0_i32_0 : i32, i32
  }
  func.func @transform_5(%arg0: i32) -> (i32, i32) {
    %c0_i32 = arith.constant 0 : i32
    %c0_i32_0 = arith.constant 0 : i32
    %c0_i32_1 = arith.constant 0 : i32
    return %c0_i32, %c0_i32_0 : i32, i32
  }
  func.func @transform_6(%arg0: i32) -> (i32, i32) {
    %c0_i32 = arith.constant 0 : i32
    %c0_i32_0 = arith.constant 0 : i32
    %c0_i32_1 = arith.constant 0 : i32
    return %c0_i32, %c0_i32_0 : i32, i32
  }
}

</mosaic_0001>

<llo_original>
// kernel: _run.1
$region0: #{_run.1}
  #allocation0 [shape = 'u32[]', space=smem, size = 0x4, offset = 0x4, fixed_abs, tag = 'smem constant byte address 0x4 - core index']
  #allocation1 [shape = 'u32[144,128]{1,0:T(1,128)}', space=vmem, size = 0x12000, scoped, tag = 'internal scratch']
  %s0 = inlined_call_operand.vmem [shape: f32[4,512], index: 0, kind: input, shape index: {}]
  %s1 = inlined_call_operand.vmem [shape: f32[8,36], index: 1, kind: input, shape index: {}]
  %s2 = inlined_call_operand.vmem [shape: f32[8,1], index: 2, kind: input, shape index: {}]
  %s3 = inlined_call_operand.vmem [shape: f32[8,72], index: 3, kind: input, shape index: {}]
  %s4 = inlined_call_operand.vmem [shape: f32[8,1], index: 4, kind: input, shape index: {}]
  %s5 = inlined_call_operand.vmem [shape: f32[8,512], index: 5, kind: output, shape index: {0}]
  %s6 = inlined_call_operand.vmem [shape: f32[8,512], index: 6, kind: output, shape index: {1}]
  %7 = xla_tuple %s5, %s6
  %s8 = sld [smem:[#allocation0]]
  $region38: #{_run.1} parent=0
    _
  %s10 = ssub.s32 1, %s8
  %s11 = scalar_select 0, %s10, %s8
  // Predicated region
  $region2: #{_run.1} parent=0 // pred_check
    _
  $region3: #{_run.1} parent=0 // pred_check_branch
    %13 = sbr.rel (0) target = $region5
  $region4: #{_run.1} parent=0 // pred_region
    _
  $region5: #{_run.1} parent=0 // pred_fallthru
    _
  // Predicated region
  $region6: #{_run.1} parent=0 // pred_check
    _
  $region7: #{_run.1} parent=0 // pred_check_branch
    %15 = sbr.rel (0) target = $region9
  $region8: #{_run.1} parent=0 // pred_region
    _
  $region9: #{_run.1} parent=0 // pred_fallthru
    _
  // Predicated region
  $region10: #{_run.1} parent=0 // pred_check
    _
  $region11: #{_run.1} parent=0 // pred_check_branch
    %17 = sbr.rel (0) target = $region13
  $region12: #{_run.1} parent=0 // pred_region
    _
  $region13: #{_run.1} parent=0 // pred_fallthru
    _
  // Predicated region
  $region14: #{_run.1} parent=0 // pred_check
    _
  $region15: #{_run.1} parent=0 // pred_check_branch
    %19 = sbr.rel (0) target = $region17
  $region16: #{_run.1} parent=0 // pred_region
    _
  $region17: #{_run.1} parent=0 // pred_fallthru
    _
  // Predicated region
  $region18: #{_run.1} parent=0 // pred_check
    _
  $region19: #{_run.1} parent=0 // pred_check_branch
    %21 = sbr.rel (0) target = $region21
  $region20: #{_run.1} parent=0 // pred_region
    _
  $region21: #{_run.1} parent=0 // pred_fallthru
    _
  %v22 = vlaneseq
  %v23 = vand.u32 %v22, 127
  %v24 = vadd.s32 %v23, 128
  %v25 = vadd.s32 %v23, 256
  %v26 = vadd.s32 %v23, 384
  %v27 = vand.u32 %v23, 15
  %v28 = vand.u32 %v24, 15
  %v29 = vand.u32 %v25, 15
  %v30 = vand.u32 %v26, 15
  %v31 = vshra.s32 %v23, 4
  %v32 = vshra.s32 %v24, 4
  %v33 = vshra.s32 %v25, 4
  %v34 = vshra.s32 %v26, 4
  %v35 = vand.u32 %v31, 15
  %v36 = vand.u32 %v32, 15
  %v37 = vand.u32 %v33, 15
  %v38 = vand.u32 %v34, 15
  %vm39 = vcmp.ge.s32.totalorder %v35, 1
  %vm40 = vcmp.ge.s32.totalorder %v36, 1
  %vm41 = vcmp.ge.s32.totalorder %v37, 1
  %vm42 = vcmp.ge.s32.totalorder %v38, 1
  %vm43 = vcmp.ge.s32.totalorder %v27, 1
  %vm44 = vcmp.ge.s32.totalorder %v28, 1
  %vm45 = vcmp.ge.s32.totalorder %v29, 1
  %vm46 = vcmp.ge.s32.totalorder %v30, 1
  %vm47 = vmand %vm39, %vm43
  %vm48 = vmand %vm40, %vm44
  %vm49 = vmand %vm41, %vm45
  %vm50 = vmand %vm42, %vm46
  %v51 = vsel %vm47, 1, 0
  %v52 = vsel %vm48, 1, 0
  %v53 = vsel %vm49, 1, 0
  %v54 = vsel %vm50, 1, 0
  %v55 = vcvt.s32.f32 %v51
  %v56 = vcvt.s32.f32 %v52
  %v57 = vcvt.s32.f32 %v53
  %v58 = vcvt.s32.f32 %v54
  %v59 = vsel %vm39, 1, 0
  %v60 = vsel %vm40, 1, 0
  %v61 = vsel %vm41, 1, 0
  %v62 = vsel %vm42, 1, 0
  %v63 = vcvt.s32.f32 %v59
  %v64 = vcvt.s32.f32 %v60
  %v65 = vcvt.s32.f32 %v61
  %v66 = vcvt.s32.f32 %v62
  %vm67 = vcmp.le.s32.totalorder %v27, 14
  %vm68 = vcmp.le.s32.totalorder %v28, 14
  %vm69 = vcmp.le.s32.totalorder %v29, 14
  %vm70 = vcmp.le.s32.totalorder %v30, 14
  %vm71 = vmand %vm39, %vm67
  %vm72 = vmand %vm40, %vm68
  %vm73 = vmand %vm41, %vm69
  %vm74 = vmand %vm42, %vm70
  %v75 = vsel %vm71, 1, 0
  %v76 = vsel %vm72, 1, 0
  %v77 = vsel %vm73, 1, 0
  %v78 = vsel %vm74, 1, 0
  %v79 = vcvt.s32.f32 %v75
  %v80 = vcvt.s32.f32 %v76
  %v81 = vcvt.s32.f32 %v77
  %v82 = vcvt.s32.f32 %v78
  %v83 = vsel %vm43, 1, 0
  %v84 = vsel %vm44, 1, 0
  %v85 = vsel %vm45, 1, 0
  %v86 = vsel %vm46, 1, 0
  %v87 = vcvt.s32.f32 %v83
  %v88 = vcvt.s32.f32 %v84
  %v89 = vcvt.s32.f32 %v85
  %v90 = vcvt.s32.f32 %v86
  %v91 = vsel %vm67, 1, 0
  %v92 = vsel %vm68, 1, 0
  %v93 = vsel %vm69, 1, 0
  %v94 = vsel %vm70, 1, 0
  %v95 = vcvt.s32.f32 %v91
  %v96 = vcvt.s32.f32 %v92
  %v97 = vcvt.s32.f32 %v93
  %v98 = vcvt.s32.f32 %v94
  %vm99 = vcmp.le.s32.totalorder %v35, 14
  %vm100 = vcmp.le.s32.totalorder %v36, 14
  %vm101 = vcmp.le.s32.totalorder %v37, 14
  %vm102 = vcmp.le.s32.totalorder %v38, 14
  %vm103 = vmand %vm99, %vm43
  %vm104 = vmand %vm100, %vm44
  %vm105 = vmand %vm101, %vm45
  %vm106 = vmand %vm102, %vm46
  %v107 = vsel %vm103, 1, 0
  %v108 = vsel %vm104, 1, 0
  %v109 = vsel %vm105, 1, 0
  %v110 = vsel %vm106, 1, 0
  %v111 = vcvt.s32.f32 %v107
  %v112 = vcvt.s32.f32 %v108
  %v113 = vcvt.s32.f32 %v109
  %v114 = vcvt.s32.f32 %v110
  %v115 = vsel %vm99, 1, 0
  %v116 = vsel %vm100, 1, 0
  %v117 = vsel %vm101, 1, 0
  %v118 = vsel %vm102, 1, 0
  %v119 = vcvt.s32.f32 %v115
  %v120 = vcvt.s32.f32 %v116
  %v121 = vcvt.s32.f32 %v117
  %v122 = vcvt.s32.f32 %v118
  %vm123 = vmand %vm99, %vm67
  %vm124 = vmand %vm100, %vm68
  %vm125 = vmand %vm101, %vm69
  %vm126 = vmand %vm102, %vm70
  %v127 = vsel %vm123, 1, 0
  %v128 = vsel %vm124, 1, 0
  %v129 = vsel %vm125, 1, 0
  %v130 = vsel %vm126, 1, 0
  %v131 = vcvt.s32.f32 %v127
  %v132 = vcvt.s32.f32 %v128
  %v133 = vcvt.s32.f32 %v129
  %v134 = vcvt.s32.f32 %v130
  %v135 = vld [vmem:[%s0] sm:$0xff]
  %v136 = vld [vmem:[%s0 + $0x8] sm:$0xff]
  %v137 = vld [vmem:[%s1] sm:$0xff]
  %v138 = vld [vmem:[%s2] sm:$0xff]
  %v141 = vcombine.high %v135, %v135
  %v142 = vcombine.high %v136, %v136
  %145 = vrot.lane.b32.xlu0 %v135, 17
  %v146 = vpop.permute.xlu0 %145
  %147 = vrot.lane.b32.xlu0 %v141, 17
  %v148 = vpop.permute.xlu0 %147
  %149 = vrot.lane.b32.xlu0 %v136, 17
  %v150 = vpop.permute.xlu0 %149
  %151 = vrot.lane.b32.xlu0 %v142, 17
  %v152 = vpop.permute.xlu0 %151
  %vm153 = vcmp.lt.s32.totalorder %v23, 17
  %v154 = vsel %vm153, %v150, %v152
  %v155 = vsel %vm153, %v148, %v150
  %v156 = vsel %vm153, %v146, %v148
  %v157 = vsel %vm153, %v152, %v146
  %v158 = vmul.f32 %v157, %v55
  %v159 = vmul.f32 %v156, %v56
  %v160 = vmul.f32 %v155, %v57
  %v161 = vmul.f32 %v154, %v58
  %162 = vrot.lane.b32.xlu0 %v135, 16
  %v163 = vpop.permute.xlu0 %162
  %164 = vrot.lane.b32.xlu0 %v141, 16
  %v165 = vpop.permute.xlu0 %164
  %166 = vrot.lane.b32.xlu0 %v136, 16
  %v167 = vpop.permute.xlu0 %166
  %168 = vrot.lane.b32.xlu0 %v142, 16
  %v169 = vpop.permute.xlu0 %168
  %vm170 = vcmp.lt.s32.totalorder %v23, 16
  %v171 = vsel %vm170, %v167, %v169
  %v172 = vsel %vm170, %v165, %v167
  %v173 = vsel %vm170, %v163, %v165
  %v174 = vsel %vm170, %v169, %v163
  %v175 = vmul.f32 %v174, %v63
  %v176 = vmul.f32 %v173, %v64
  %v177 = vmul.f32 %v172, %v65
  %v178 = vmul.f32 %v171, %v66
  %179 = vrot.lane.b32.xlu0 %v135, 15
  %v180 = vpop.permute.xlu0 %179
  %181 = vrot.lane.b32.xlu0 %v141, 15
  %v182 = vpop.permute.xlu0 %181
  %183 = vrot.lane.b32.xlu0 %v136, 15
  %v184 = vpop.permute.xlu0 %183
  %185 = vrot.lane.b32.xlu0 %v142, 15
  %v186 = vpop.permute.xlu0 %185
  %vm187 = vcmp.lt.s32.totalorder %v23, 15
  %v188 = vsel %vm187, %v184, %v186
  %v189 = vsel %vm187, %v182, %v184
  %v190 = vsel %vm187, %v180, %v182
  %v191 = vsel %vm187, %v186, %v180
  %v192 = vmul.f32 %v191, %v79
  %v193 = vmul.f32 %v190, %v80
  %v194 = vmul.f32 %v189, %v81
  %v195 = vmul.f32 %v188, %v82
  %196 = vrot.lane.b32.xlu0 %v135, 1
  %v197 = vpop.permute.xlu0 %196
  %198 = vrot.lane.b32.xlu0 %v141, 1
  %v199 = vpop.permute.xlu0 %198
  %200 = vrot.lane.b32.xlu0 %v136, 1
  %v201 = vpop.permute.xlu0 %200
  %202 = vrot.lane.b32.xlu0 %v142, 1
  %v203 = vpop.permute.xlu0 %202
  %vm204 = vcmp.lt.s32.totalorder %v23, 1
  %v205 = vsel %vm204, %v201, %v203
  %v206 = vsel %vm204, %v199, %v201
  %v207 = vsel %vm204, %v197, %v199
  %v208 = vsel %vm204, %v203, %v197
  %v209 = vmul.f32 %v208, %v87
  %v210 = vmul.f32 %v207, %v88
  %v211 = vmul.f32 %v206, %v89
  %v212 = vmul.f32 %v205, %v90
  %213 = vrot.lane.b32.xlu0 %v135, 127
  %v214 = vpop.permute.xlu0 %213
  %215 = vrot.lane.b32.xlu0 %v141, 127
  %v216 = vpop.permute.xlu0 %215
  %217 = vrot.lane.b32.xlu0 %v136, 127
  %v218 = vpop.permute.xlu0 %217
  %219 = vrot.lane.b32.xlu0 %v142, 127
  %v220 = vpop.permute.xlu0 %219
  %vm221 = vcmp.lt.s32.totalorder %v23, 127
  %v222 = vsel %vm221, %v218, %v220
  %v223 = vsel %vm221, %v216, %v218
  %v224 = vsel %vm221, %v214, %v216
  %v225 = vsel %vm221, %v220, %v214
  %v226 = vmul.f32 %v224, %v95
  %v227 = vmul.f32 %v223, %v96
  %v228 = vmul.f32 %v222, %v97
  %v229 = vmul.f32 %v225, %v98
  %230 = vrot.lane.b32.xlu0 %v135, 113
  %v231 = vpop.permute.xlu0 %230
  %232 = vrot.lane.b32.xlu0 %v141, 113
  %v233 = vpop.permute.xlu0 %232
  %234 = vrot.lane.b32.xlu0 %v136, 113
  %v235 = vpop.permute.xlu0 %234
  %236 = vrot.lane.b32.xlu0 %v142, 113
  %v237 = vpop.permute.xlu0 %236
  %vm238 = vcmp.lt.s32.totalorder %v23, 113
  %v239 = vsel %vm238, %v235, %v237
  %v240 = vsel %vm238, %v233, %v235
  %v241 = vsel %vm238, %v231, %v233
  %v242 = vsel %vm238, %v237, %v231
  %v243 = vmul.f32 %v241, %v111
  %v244 = vmul.f32 %v240, %v112
  %v245 = vmul.f32 %v239, %v113
  %v246 = vmul.f32 %v242, %v114
  %247 = vrot.lane.b32.xlu0 %v135, 112
  %v248 = vpop.permute.xlu0 %247
  %249 = vrot.lane.b32.xlu0 %v141, 112
  %v250 = vpop.permute.xlu0 %249
  %251 = vrot.lane.b32.xlu0 %v136, 112
  %v252 = vpop.permute.xlu0 %251
  %253 = vrot.lane.b32.xlu0 %v142, 112
  %v254 = vpop.permute.xlu0 %253
  %vm255 = vcmp.lt.s32.totalorder %v23, 112
  %v256 = vsel %vm255, %v252, %v254
  %v257 = vsel %vm255, %v250, %v252
  %v258 = vsel %vm255, %v248, %v250
  %v259 = vsel %vm255, %v254, %v248
  %v260 = vmul.f32 %v258, %v119
  %v261 = vmul.f32 %v257, %v120
  %v262 = vmul.f32 %v256, %v121
  %v263 = vmul.f32 %v259, %v122
  %264 = vrot.lane.b32.xlu0 %v135, 111
  %v265 = vpop.permute.xlu0 %264
  %266 = vrot.lane.b32.xlu0 %v141, 111
  %v267 = vpop.permute.xlu0 %266
  %268 = vrot.lane.b32.xlu0 %v136, 111
  %v269 = vpop.permute.xlu0 %268
  %270 = vrot.lane.b32.xlu0 %v142, 111
  %v271 = vpop.permute.xlu0 %270
  %vm272 = vcmp.lt.s32.totalorder %v23, 111
  %v273 = vsel %vm272, %v269, %v271
  %v274 = vsel %vm272, %v267, %v269
  %v275 = vsel %vm272, %v265, %v267
  %v276 = vsel %vm272, %v271, %v265
  %v277 = vmul.f32 %v275, %v131
  %v278 = vmul.f32 %v274, %v132
  %v279 = vmul.f32 %v273, %v133
  %v280 = vmul.f32 %v276, %v134
  %v285 = vrot.slane %v175, 4
  %v286 = vrot.slane %v176, 4
  %v287 = vrot.slane %v177, 4
  %v288 = vrot.slane %v178, 4
  %v297 = vrot.slane %v209, 4
  %v298 = vrot.slane %v210, 4
  %v299 = vrot.slane %v211, 4
  %v300 = vrot.slane %v212, 4
  %v309 = vrot.slane %v226, 4
  %v310 = vrot.slane %v227, 4
  %v311 = vrot.slane %v228, 4
  %v312 = vrot.slane %v229, 4
  %v321 = vrot.slane %v260, 4
  %v322 = vrot.slane %v261, 4
  %v323 = vrot.slane %v262, 4
  %v324 = vrot.slane %v263, 4
  %vm329 = vcmask 1043456
  %v330 = vsel %vm329, %v158, %v285
  %v331 = vsel %vm329, %v159, %v286
  %v332 = vsel %vm329, %v160, %v287
  %v333 = vsel %vm329, %v161, %v288
  %v334 = vsel %vm329, %v192, %v297
  %v335 = vsel %vm329, %v193, %v298
  %v336 = vsel %vm329, %v194, %v299
  %v337 = vsel %vm329, %v195, %v300
  %v338 = vsel %vm329, %v135, %v309
  %v339 = vsel %vm329, %v141, %v310
  %v340 = vsel %vm329, %v136, %v311
  %v341 = vsel %vm329, %v142, %v312
  %v342 = vsel %vm329, %v243, %v321
  %v343 = vsel %vm329, %v244, %v322
  %v344 = vsel %vm329, %v245, %v323
  %v345 = vsel %vm329, %v246, %v324
  %347 = vset.pattern.permute.xlu0 0
  %348 = vperm.xlu0 %347, %v138
  %v349 = vpop.permute.xlu0 %348
  %vm351 = vcmask 293888
  %v353 = vsel %vm351, %v137, 0
  %v356 = vsel %vm329, %v277, 0
  %v359 = vsel %vm329, %v278, 0
  %v362 = vsel %vm329, %v279, 0
  %v365 = vsel %vm329, %v280, 0
  %v367 = vand.u32 %v331, 4294901760
  %368 = vmatprep.subr.mxu0 %v367
  %v369 = vand.u32 %v330, 4294901760
  %370 = vmatpush1.msra.mxu0 %v369
  %v371 = vand.u32 %v335, 4294901760
  %372 = vmatprep.subr.mxu0 %v371
  %v373 = vand.u32 %v334, 4294901760
  %374 = vmatpush1.msra.mxu0 %v373
  %v375 = vand.u32 %v339, 4294901760
  %376 = vmatprep.subr.mxu0 %v375
  %v377 = vand.u32 %v338, 4294901760
  %378 = vmatpush1.msra.mxu0 %v377
  %v379 = vand.u32 %v343, 4294901760
  %380 = vmatprep.subr.mxu0 %v379
  %v381 = vand.u32 %v342, 4294901760
  %382 = vmatpush1.msra.mxu0 %v381
  %v383 = vand.u32 %v359, 4294901760
  %384 = vmatprep.subr.mxu0 %v383
  %v385 = vand.u32 %v356, 4294901760
  %386 = vmatpush1.msra.mxu0 %v385
  %387 = vmatprep.subr.mxu0 0.0
  %388 = vmatpush1.msra.mxu0 0.0
  %389 = vmatprep.subr.mxu0 0.0
  %390 = vmatpush1.msra.mxu0 0.0
  %391 = vmatprep.subr.mxu0 0.0
  %392 = vmatpush1.msra.mxu0 0.0
  %393 = vmatprep.subr.mxu0 0.0
  %394 = vmatpush1.msra.mxu0 0.0
  %395 = vmatprep.subr.mxu0 0.0
  %396 = vmatpush1.msra.mxu0 0.0
  %397 = vmatprep.subr.mxu0 0.0
  %398 = vmatpush1.msra.mxu0 0.0
  %399 = vmatprep.subr.mxu0 0.0
  %400 = vmatpush1.msra.mxu0 0.0
  %401 = vmatprep.subr.mxu0 0.0
  %402 = vmatpush1.msra.mxu0 0.0
  %403 = vmatprep.subr.mxu0 0.0
  %404 = vmatpush1.msra.mxu0 0.0
  %405 = vmatprep.subr.mxu0 0.0
  %406 = vmatpush1.msra.mxu0 0.0
  %407 = vmatprep.subr.mxu0 0.0
  %408 = vmatpush1.msra.mxu0 0.0
  %409 = vmatprep.subr.mxu0 0.0
  %410 = vmatpush1.msra.mxu0 0.0
  %411 = vmatprep.subr.mxu0 0.0
  %412 = vmatpush1.msra.mxu0 0.0
  %413 = vmatprep.subr.mxu0 0.0
  %414 = vmatpush1.msra.mxu0 0.0
  %415 = vmatprep.subr.mxu0 0.0
  %416 = vmatpush1.msra.mxu0 0.0
  %417 = vmatprep.subr.mxu0 0.0
  %418 = vmatpush1.msra.mxu0 0.0
  %419 = vmatprep.subr.mxu0 0.0
  %420 = vmatpush1.msra.mxu0 0.0
  %421 = vmatprep.subr.mxu0 0.0
  %422 = vmatpush1.msra.mxu0 0.0
  %423 = vmatprep.subr.mxu0 0.0
  %424 = vmatpush1.msra.mxu0 0.0
  %425 = vmatprep.subr.mxu0 0.0
  %426 = vmatpush1.msra.mxu0 0.0
  %427 = vmatprep.subr.mxu0 0.0
  %428 = vmatpush1.msra.mxu0 0.0
  %429 = vmatprep.subr.mxu0 0.0
  %430 = vmatpush1.msra.mxu0 0.0
  %431 = vmatprep.subr.mxu0 0.0
  %432 = vmatpush1.msra.mxu0 0.0
  %433 = vmatprep.subr.mxu0 0.0
  %434 = vmatpush1.msra.mxu0 0.0
  %435 = vmatprep.subr.mxu0 0.0
  %436 = vmatpush1.msra.mxu0 0.0
  %437 = vmatprep.subr.mxu0 0.0
  %438 = vmatpush1.msra.mxu0 0.0
  %439 = vmatprep.subr.mxu0 0.0
  %440 = vmatpush1.msra.mxu0 0.0
  %441 = vmatprep.mubr.f32.mxu0 0.0
  %v442 = vand.u32 %v353, 4294901760
  %v443 = vsub.f32 %v353, %v442
  %v444 = vand.u32 %v443, 4294901760
  %v445 = vsub.f32 %v443, %v444
  %v446 = vand.u32 %v445, 4294901760
  %447 = vmatmul.mubr.f32.gmra.mrb[0].mxu0 %v446
  %v448 = vpop.f32.mrb[0].mxu0
  %v449 = vadd.f32 %v349, %v448
  %v450 = vpop.f32.mrb[0].mxu0
  %v451 = vadd.f32 %v349, %v450
  %452 = vdwg.mxu0
  %v453 = vand.u32 %v331, 4294901760
  %v454 = vsub.f32 %v331, %v453
  %v455 = vand.u32 %v454, 4294901760
  %v456 = vsub.f32 %v454, %v455
  %v457 = vand.u32 %v456, 4294901760
  %458 = vmatprep.subr.mxu0 %v457
  %v459 = vand.u32 %v330, 4294901760
  %v460 = vsub.f32 %v330, %v459
  %v461 = vand.u32 %v460, 4294901760
  %v462 = vsub.f32 %v460, %v461
  %v463 = vand.u32 %v462, 4294901760
  %464 = vmatpush1.msra.mxu0 %v463
  %v465 = vand.u32 %v335, 4294901760
  %v466 = vsub.f32 %v335, %v465
  %v467 = vand.u32 %v466, 4294901760
  %v468 = vsub.f32 %v466, %v467
  %v469 = vand.u32 %v468, 4294901760
  %470 = vmatprep.subr.mxu0 %v469
  %v471 = vand.u32 %v334, 4294901760
  %v472 = vsub.f32 %v334, %v471
  %v473 = vand.u32 %v472, 4294901760
  %v474 = vsub.f32 %v472, %v473
  %v475 = vand.u32 %v474, 4294901760
  %476 = vmatpush1.msra.mxu0 %v475
  %v477 = vand.u32 %v339, 4294901760
  %v478 = vsub.f32 %v339, %v477
  %v479 = vand.u32 %v478, 4294901760
  %v480 = vsub.f32 %v478, %v479
  %v481 = vand.u32 %v480, 4294901760
  %482 = vmatprep.subr.mxu0 %v481
  %v483 = vand.u32 %v338, 4294901760
  %v484 = vsub.f32 %v338, %v483
  %v485 = vand.u32 %v484, 4294901760
  %v486 = vsub.f32 %v484, %v485
  %v487 = vand.u32 %v486, 4294901760
  %488 = vmatpush1.msra.mxu0 %v487
  %v489 = vand.u32 %v343, 4294901760
  %v490 = vsub.f32 %v343, %v489
  %v491 = vand.u32 %v490, 4294901760
  %v492 = vsub.f32 %v490, %v491
  %v493 = vand.u32 %v492, 4294901760
  %494 = vmatprep.subr.mxu0 %v493
  %v495 = vand.u32 %v342, 4294901760
  %v496 = vsub.f32 %v342, %v495
  %v497 = vand.u32 %v496, 4294901760
  %v498 = vsub.f32 %v496, %v497
  %v499 = vand.u32 %v498, 4294901760
  %500 = vmatpush1.msra.mxu0 %v499
  %v501 = vand.u32 %v359, 4294901760
  %v502 = vsub.f32 %v359, %v501
  %v503 = vand.u32 %v502, 4294901760
  %v504 = vsub.f32 %v502, %v503
  %v505 = vand.u32 %v504, 4294901760
  %506 = vmatprep.subr.mxu0 %v505
  %v507 = vand.u32 %v356, 4294901760
  %v508 = vsub.f32 %v356, %v507
  %v509 = vand.u32 %v508, 4294901760
  %v510 = vsub.f32 %v508, %v509
  %v511 = vand.u32 %v510, 4294901760
  %512 = vmatpush1.msra.mxu0 %v511
  %513 = vmatprep.subr.mxu0 0.0
  %514 = vmatpush1.msra.mxu0 0.0
  %515 = vmatprep.subr.mxu0 0.0
  %516 = vmatpush1.msra.mxu0 0.0
  %517 = vmatprep.subr.mxu0 0.0
  %518 = vmatpush1.msra.mxu0 0.0
  %519 = vmatprep.subr.mxu0 0.0
  %520 = vmatpush1.msra.mxu0 0.0
  %521 = vmatprep.subr.mxu0 0.0
  %522 = vmatpush1.msra.mxu0 0.0
  %523 = vmatprep.subr.mxu0 0.0
  %524 = vmatpush1.msra.mxu0 0.0
  %525 = vmatprep.subr.mxu0 0.0
  %526 = vmatpush1.msra.mxu0 0.0
  %527 = vmatprep.subr.mxu0 0.0
  %528 = vmatpush1.msra.mxu0 0.0
  %529 = vmatprep.subr.mxu0 0.0
  %530 = vmatpush1.msra.mxu0 0.0
  %531 = vmatprep.subr.mxu0 0.0
  %532 = vmatpush1.msra.mxu0 0.0
  %533 = vmatprep.subr.mxu0 0.0
  %534 = vmatpush1.msra.mxu0 0.0
  %535 = vmatprep.subr.mxu0 0.0
  %536 = vmatpush1.msra.mxu0 0.0
  %537 = vmatprep.subr.mxu0 0.0
  %538 = vmatpush1.msra.mxu0 0.0
  %539 = vmatprep.subr.mxu0 0.0
  %540 = vmatpush1.msra.mxu0 0.0
  %541 = vmatprep.subr.mxu0 0.0
  %542 = vmatpush1.msra.mxu0 0.0
  %543 = vmatprep.subr.mxu0 0.0
  %544 = vmatpush1.msra.mxu0 0.0
  %545 = vmatprep.subr.mxu0 0.0
  %546 = vmatpush1.msra.mxu0 0.0
  %547 = vmatprep.subr.mxu0 0.0
  %548 = vmatpush1.msra.mxu0 0.0
  %549 = vmatprep.subr.mxu0 0.0
  %550 = vmatpush1.msra.mxu0 0.0
  %551 = vmatprep.subr.mxu0 0.0
  %552 = vmatpush1.msra.mxu0 0.0
  %553 = vmatprep.subr.mxu0 0.0
  %554 = vmatpush1.msra.mxu0 0.0
  %555 = vmatprep.subr.mxu0 0.0
  %556 = vmatpush1.msra.mxu0 0.0
  %557 = vmatprep.subr.mxu0 0.0
  %558 = vmatpush1.msra.mxu0 0.0
  %559 = vmatprep.subr.mxu0 0.0
  %560 = vmatpush1.msra.mxu0 0.0
  %561 = vmatprep.subr.mxu0 0.0
  %562 = vmatpush1.msra.mxu0 0.0
  %563 = vmatprep.subr.mxu0 0.0
  %564 = vmatpush1.msra.mxu0 0.0
  %565 = vmatprep.subr.mxu0 0.0
  %566 = vmatpush1.msra.mxu0 0.0
  %567 = vmatprep.mubr.f32.mxu0 0.0
  %v568 = vand.u32 %v353, 4294901760
  %569 = vmatmul.mubr.f32.gmra.mrb[0].mxu0 %v568
  %v570 = vpop.f32.mrb[0].mxu0
  %v571 = vadd.f32 %v449, %v570
  %v572 = vpop.f32.mrb[0].mxu0
  %v573 = vadd.f32 %v451, %v572
  %574 = vdwg.mxu0
  %v575 = vand.u32 %v331, 4294901760
  %v576 = vsub.f32 %v331, %v575
  %577 = vmatprep.subr.mxu0 %v576
  %v578 = vand.u32 %v330, 4294901760
  %v579 = vsub.f32 %v330, %v578
  %580 = vmatpush1.msra.mxu0 %v579
  %v581 = vand.u32 %v335, 4294901760
  %v582 = vsub.f32 %v335, %v581
  %583 = vmatprep.subr.mxu0 %v582
  %v584 = vand.u32 %v334, 4294901760
  %v585 = vsub.f32 %v334, %v584
  %586 = vmatpush1.msra.mxu0 %v585
  %v587 = vand.u32 %v339, 4294901760
  %v588 = vsub.f32 %v339, %v587
  %589 = vmatprep.subr.mxu0 %v588
  %v590 = vand.u32 %v338, 4294901760
  %v591 = vsub.f32 %v338, %v590
  %592 = vmatpush1.msra.mxu0 %v591
  %v593 = vand.u32 %v343, 4294901760
  %v594 = vsub.f32 %v343, %v593
  %595 = vmatprep.subr.mxu0 %v594
  %v596 = vand.u32 %v342, 4294901760
  %v597 = vsub.f32 %v342, %v596
  %598 = vmatpush1.msra.mxu0 %v597
  %v599 = vand.u32 %v359, 4294901760
  %v600 = vsub.f32 %v359, %v599
  %601 = vmatprep.subr.mxu0 %v600
  %v602 = vand.u32 %v356, 4294901760
  %v603 = vsub.f32 %v356, %v602
  %604 = vmatpush1.msra.mxu0 %v603
  %605 = vmatprep.subr.mxu0 0.0
  %606 = vmatpush1.msra.mxu0 0.0
  %607 = vmatprep.subr.mxu0 0.0
  %608 = vmatpush1.msra.mxu0 0.0
  %609 = vmatprep.subr.mxu0 0.0
  %610 = vmatpush1.msra.mxu0 0.0
  %611 = vmatprep.subr.mxu0 0.0
  %612 = vmatpush1.msra.mxu0 0.0
  %613 = vmatprep.subr.mxu0 0.0
  %614 = vmatpush1.msra.mxu0 0.0
  %615 = vmatprep.subr.mxu0 0.0
  %616 = vmatpush1.msra.mxu0 0.0
  %617 = vmatprep.subr.mxu0 0.0
  %618 = vmatpush1.msra.mxu0 0.0
  %619 = vmatprep.subr.mxu0 0.0
  %620 = vmatpush1.msra.mxu0 0.0
  %621 = vmatprep.subr.mxu0 0.0
  %622 = vmatpush1.msra.mxu0 0.0
  %623 = vmatprep.subr.mxu0 0.0
  %624 = vmatpush1.msra.mxu0 0.0
  %625 = vmatprep.subr.mxu0 0.0
  %626 = vmatpush1.msra.mxu0 0.0
  %627 = vmatprep.subr.mxu0 0.0
  %628 = vmatpush1.msra.mxu0 0.0
  %629 = vmatprep.subr.mxu0 0.0
  %630 = vmatpush1.msra.mxu0 0.0
  %631 = vmatprep.subr.mxu0 0.0
  %632 = vmatpush1.msra.mxu0 0.0
  %633 = vmatprep.subr.mxu0 0.0
  %634 = vmatpush1.msra.mxu0 0.0
  %635 = vmatprep.subr.mxu0 0.0
  %636 = vmatpush1.msra.mxu0 0.0
  %637 = vmatprep.subr.mxu0 0.0
  %638 = vmatpush1.msra.mxu0 0.0
  %639 = vmatprep.subr.mxu0 0.0
  %640 = vmatpush1.msra.mxu0 0.0
  %641 = vmatprep.subr.mxu0 0.0
  %642 = vmatpush1.msra.mxu0 0.0
  %643 = vmatprep.subr.mxu0 0.0
  %644 = vmatpush1.msra.mxu0 0.0
  %645 = vmatprep.subr.mxu0 0.0
  %646 = vmatpush1.msra.mxu0 0.0
  %647 = vmatprep.subr.mxu0 0.0
  %648 = vmatpush1.msra.mxu0 0.0
  %649 = vmatprep.subr.mxu0 0.0
  %650 = vmatpush1.msra.mxu0 0.0
  %651 = vmatprep.subr.mxu0 0.0
  %652 = vmatpush1.msra.mxu0 0.0
  %653 = vmatprep.subr.mxu0 0.0
  %654 = vmatpush1.msra.mxu0 0.0
  %655 = vmatprep.subr.mxu0 0.0
  %656 = vmatpush1.msra.mxu0 0.0
  %657 = vmatprep.subr.mxu0 0.0
  %658 = vmatpush1.msra.mxu0 0.0
  %659 = vmatprep.mubr.f32.mxu0 0.0
  %v660 = vand.u32 %v353, 4294901760
  %v661 = vsub.f32 %v353, %v660
  %662 = vmatmul.mubr.f32.gmra.mrb[0].mxu0 %v661
  %v663 = vpop.f32.mrb[0].mxu0
  %v664 = vadd.f32 %v571, %v663
  %v665 = vpop.f32.mrb[0].mxu0
  %v666 = vadd.f32 %v573, %v665
  %667 = vdwg.mxu0
  %v668 = vand.u32 %v331, 4294901760
  %669 = vmatprep.subr.mxu0 %v668
  %v670 = vand.u32 %v330, 4294901760
  %671 = vmatpush1.msra.mxu0 %v670
  %v672 = vand.u32 %v335, 4294901760
  %673 = vmatprep.subr.mxu0 %v672
  %v674 = vand.u32 %v334, 4294901760
  %675 = vmatpush1.msra.mxu0 %v674
  %v676 = vand.u32 %v339, 4294901760
  %677 = vmatprep.subr.mxu0 %v676
  %v678 = vand.u32 %v338, 4294901760
  %679 = vmatpush1.msra.mxu0 %v678
  %v680 = vand.u32 %v343, 4294901760
  %681 = vmatprep.subr.mxu0 %v680
  %v682 = vand.u32 %v342, 4294901760
  %683 = vmatpush1.msra.mxu0 %v682
  %v684 = vand.u32 %v359, 4294901760
  %685 = vmatprep.subr.mxu0 %v684
  %v686 = vand.u32 %v356, 4294901760
  %687 = vmatpush1.msra.mxu0 %v686
  %688 = vmatprep.subr.mxu0 0.0
  %689 = vmatpush1.msra.mxu0 0.0
  %690 = vmatprep.subr.mxu0 0.0
  %691 = vmatpush1.msra.mxu0 0.0
  %692 = vmatprep.subr.mxu0 0.0
  %693 = vmatpush1.msra.mxu0 0.0
  %694 = vmatprep.subr.mxu0 0.0
  %695 = vmatpush1.msra.mxu0 0.0
  %696 = vmatprep.subr.mxu0 0.0
  %697 = vmatpush1.msra.mxu0 0.0
  %698 = vmatprep.subr.mxu0 0.0
  %699 = vmatpush1.msra.mxu0 0.0
  %700 = vmatprep.subr.mxu0 0.0
  %701 = vmatpush1.msra.mxu0 0.0
  %702 = vmatprep.subr.mxu0 0.0
  %703 = vmatpush1.msra.mxu0 0.0
  %704 = vmatprep.subr.mxu0 0.0
  %705 = vmatpush1.msra.mxu0 0.0
  %706 = vmatprep.subr.mxu0 0.0
  %707 = vmatpush1.msra.mxu0 0.0
  %708 = vmatprep.subr.mxu0 0.0
  %709 = vmatpush1.msra.mxu0 0.0
  %710 = vmatprep.subr.mxu0 0.0
  %711 = vmatpush1.msra.mxu0 0.0
  %712 = vmatprep.subr.mxu0 0.0
  %713 = vmatpush1.msra.mxu0 0.0
  %714 = vmatprep.subr.mxu0 0.0
  %715 = vmatpush1.msra.mxu0 0.0
  %716 = vmatprep.subr.mxu0 0.0
  %717 = vmatpush1.msra.mxu0 0.0
  %718 = vmatprep.subr.mxu0 0.0
  %719 = vmatpush1.msra.mxu0 0.0
  %720 = vmatprep.subr.mxu0 0.0
  %721 = vmatpush1.msra.mxu0 0.0
  %722 = vmatprep.subr.mxu0 0.0
  %723 = vmatpush1.msra.mxu0 0.0
  %724 = vmatprep.subr.mxu0 0.0
  %725 = vmatpush1.msra.mxu0 0.0
  %726 = vmatprep.subr.mxu0 0.0
  %727 = vmatpush1.msra.mxu0 0.0
  %728 = vmatprep.subr.mxu0 0.0
  %729 = vmatpush1.msra.mxu0 0.0
  %730 = vmatprep.subr.mxu0 0.0
  %731 = vmatpush1.msra.mxu0 0.0
  %732 = vmatprep.subr.mxu0 0.0
  %733 = vmatpush1.msra.mxu0 0.0
  %734 = vmatprep.subr.mxu0 0.0
  %735 = vmatpush1.msra.mxu0 0.0
  %736 = vmatprep.subr.mxu0 0.0
  %737 = vmatpush1.msra.mxu0 0.0
  %738 = vmatprep.subr.mxu0 0.0
  %739 = vmatpush1.msra.mxu0 0.0
  %740 = vmatprep.subr.mxu0 0.0
  %741 = vmatpush1.msra.mxu0 0.0
  %742 = vmatprep.mubr.f32.mxu0 0.0
  %v743 = vand.u32 %v353, 4294901760
  %v744 = vsub.f32 %v353, %v743
  %v745 = vand.u32 %v744, 4294901760
  %746 = vmatmul.mubr.f32.gmra.mrb[0].mxu0 %v745
  %v747 = vpop.f32.mrb[0].mxu0
  %v748 = vadd.f32 %v664, %v747
  %v749 = vpop.f32.mrb[0].mxu0
  %v750 = vadd.f32 %v666, %v749
  %751 = vdwg.mxu0
  %v752 = vand.u32 %v331, 4294901760
  %v753 = vsub.f32 %v331, %v752
  %v754 = vand.u32 %v753, 4294901760
  %755 = vmatprep.subr.mxu0 %v754
  %v756 = vand.u32 %v330, 4294901760
  %v757 = vsub.f32 %v330, %v756
  %v758 = vand.u32 %v757, 4294901760
  %759 = vmatpush1.msra.mxu0 %v758
  %v760 = vand.u32 %v335, 4294901760
  %v761 = vsub.f32 %v335, %v760
  %v762 = vand.u32 %v761, 4294901760
  %763 = vmatprep.subr.mxu0 %v762
  %v764 = vand.u32 %v334, 4294901760
  %v765 = vsub.f32 %v334, %v764
  %v766 = vand.u32 %v765, 4294901760
  %767 = vmatpush1.msra.mxu0 %v766
  %v768 = vand.u32 %v339, 4294901760
  %v769 = vsub.f32 %v339, %v768
  %v770 = vand.u32 %v769, 4294901760
  %771 = vmatprep.subr.mxu0 %v770
  %v772 = vand.u32 %v338, 4294901760
  %v773 = vsub.f32 %v338, %v772
  %v774 = vand.u32 %v773, 4294901760
  %775 = vmatpush1.msra.mxu0 %v774
  %v776 = vand.u32 %v343, 4294901760
  %v777 = vsub.f32 %v343, %v776
  %v778 = vand.u32 %v777, 4294901760
  %779 = vmatprep.subr.mxu0 %v778
  %v780 = vand.u32 %v342, 4294901760
  %v781 = vsub.f32 %v342, %v780
  %v782 = vand.u32 %v781, 4294901760
  %783 = vmatpush1.msra.mxu0 %v782
  %v784 = vand.u32 %v359, 4294901760
  %v785 = vsub.f32 %v359, %v784
  %v786 = vand.u32 %v785, 4294901760
  %787 = vmatprep.subr.mxu0 %v786
  %v788 = vand.u32 %v356, 4294901760
  %v789 = vsub.f32 %v356, %v788
  %v790 = vand.u32 %v789, 4294901760
  %791 = vmatpush1.msra.mxu0 %v790
  %792 = vmatprep.subr.mxu0 0.0
  %793 = vmatpush1.msra.mxu0 0.0
  %794 = vmatprep.subr.mxu0 0.0
  %795 = vmatpush1.msra.mxu0 0.0
  %796 = vmatprep.subr.mxu0 0.0
  %797 = vmatpush1.msra.mxu0 0.0
  %798 = vmatprep.subr.mxu0 0.0
  %799 = vmatpush1.msra.mxu0 0.0
  %800 = vmatprep.subr.mxu0 0.0
  %801 = vmatpush1.msra.mxu0 0.0
  %802 = vmatprep.subr.mxu0 0.0
  %803 = vmatpush1.msra.mxu0 0.0
  %804 = vmatprep.subr.mxu0 0.0
  %805 = vmatpush1.msra.mxu0 0.0
  %806 = vmatprep.subr.mxu0 0.0
  %807 = vmatpush1.msra.mxu0 0.0
  %808 = vmatprep.subr.mxu0 0.0
  %809 = vmatpush1.msra.mxu0 0.0
  %810 = vmatprep.subr.mxu0 0.0
  %811 = vmatpush1.msra.mxu0 0.0
  %812 = vmatprep.subr.mxu0 0.0
  %813 = vmatpush1.msra.mxu0 0.0
  %814 = vmatprep.subr.mxu0 0.0
  %815 = vmatpush1.msra.mxu0 0.0
  %816 = vmatprep.subr.mxu0 0.0
  %817 = vmatpush1.msra.mxu0 0.0
  %818 = vmatprep.subr.mxu0 0.0
  %819 = vmatpush1.msra.mxu0 0.0
  %820 = vmatprep.subr.mxu0 0.0
  %821 = vmatpush1.msra.mxu0 0.0
  %822 = vmatprep.subr.mxu0 0.0
  %823 = vmatpush1.msra.mxu0 0.0
  %824 = vmatprep.subr.mxu0 0.0
  %825 = vmatpush1.msra.mxu0 0.0
  %826 = vmatprep.subr.mxu0 0.0
  %827 = vmatpush1.msra.mxu0 0.0
  %828 = vmatprep.subr.mxu0 0.0
  %829 = vmatpush1.msra.mxu0 0.0
  %830 = vmatprep.subr.mxu0 0.0
  %831 = vmatpush1.msra.mxu0 0.0
  %832 = vmatprep.subr.mxu0 0.0
  %833 = vmatpush1.msra.mxu0 0.0
  %834 = vmatprep.subr.mxu0 0.0
  %835 = vmatpush1.msra.mxu0 0.0
  %836 = vmatprep.subr.mxu0 0.0
  %837 = vmatpush1.msra.mxu0 0.0
  %838 = vmatprep.subr.mxu0 0.0
  %839 = vmatpush1.msra.mxu0 0.0
  %840 = vmatprep.subr.mxu0 0.0
  %841 = vmatpush1.msra.mxu0 0.0
  %842 = vmatprep.subr.mxu0 0.0
  %843 = vmatpush1.msra.mxu0 0.0
  %844 = vmatprep.subr.mxu0 0.0
  %845 = vmatpush1.msra.mxu0 0.0
  %846 = vmatprep.mubr.f32.mxu0 0.0
  %v847 = vand.u32 %v353, 4294901760
  %848 = vmatmul.mubr.f32.gmra.mrb[0].mxu0 %v847
  %v849 = vpop.f32.mrb[0].mxu0
  %v850 = vadd.f32 %v748, %v849
  %v851 = vpop.f32.mrb[0].mxu0
  %v852 = vadd.f32 %v750, %v851
  %853 = vdwg.mxu0
  %v854 = vand.u32 %v331, 4294901760
  %855 = vmatprep.subr.mxu0 %v854
  %v856 = vand.u32 %v330, 4294901760
  %857 = vmatpush1.msra.mxu0 %v856
  %v858 = vand.u32 %v335, 4294901760
  %859 = vmatprep.subr.mxu0 %v858
  %v860 = vand.u32 %v334, 4294901760
  %861 = vmatpush1.msra.mxu0 %v860
  %v862 = vand.u32 %v339, 4294901760
  %863 = vmatprep.subr.mxu0 %v862
  %v864 = vand.u32 %v338, 4294901760
  %865 = vmatpush1.msra.mxu0 %v864
  %v866 = vand.u32 %v343, 4294901760
  %867 = vmatprep.subr.mxu0 %v866
  %v868 = vand.u32 %v342, 4294901760
  %869 = vmatpush1.msra.mxu0 %v868
  %v870 = vand.u32 %v359, 4294901760
  %871 = vmatprep.subr.mxu0 %v870
  %v872 = vand.u32 %v356, 4294901760
  %873 = vmatpush1.msra.mxu0 %v872
  %874 = vmatprep.subr.mxu0 0.0
  %875 = vmatpush1.msra.mxu0 0.0
  %876 = vmatprep.subr.mxu0 0.0
  %877 = vmatpush1.msra.mxu0 0.0
  %878 = vmatprep.subr.mxu0 0.0
  %879 = vmatpush1.msra.mxu0 0.0
  %880 = vmatprep.subr.mxu0 0.0
  %881 = vmatpush1.msra.mxu0 0.0
  %882 = vmatprep.subr.mxu0 0.0
  %883 = vmatpush1.msra.mxu0 0.0
  %884 = vmatprep.subr.mxu0 0.0
  %885 = vmatpush1.msra.mxu0 0.0
  %886 = vmatprep.subr.mxu0 0.0
  %887 = vmatpush1.msra.mxu0 0.0
  %888 = vmatprep.subr.mxu0 0.0
  %889 = vmatpush1.msra.mxu0 0.0
  %890 = vmatprep.subr.mxu0 0.0
  %891 = vmatpush1.msra.mxu0 0.0
  %892 = vmatprep.subr.mxu0 0.0
  %893 = vmatpush1.msra.mxu0 0.0
  %894 = vmatprep.subr.mxu0 0.0
  %895 = vmatpush1.msra.mxu0 0.0
  %896 = vmatprep.subr.mxu0 0.0
  %897 = vmatpush1.msra.mxu0 0.0
  %898 = vmatprep.subr.mxu0 0.0
  %899 = vmatpush1.msra.mxu0 0.0
  %900 = vmatprep.subr.mxu0 0.0
  %901 = vmatpush1.msra.mxu0 0.0
  %902 = vmatprep.subr.mxu0 0.0
  %903 = vmatpush1.msra.mxu0 0.0
  %904 = vmatprep.subr.mxu0 0.0
  %905 = vmatpush1.msra.mxu0 0.0
  %906 = vmatprep.subr.mxu0 0.0
  %907 = vmatpush1.msra.mxu0 0.0
  %908 = vmatprep.subr.mxu0 0.0
  %909 = vmatpush1.msra.mxu0 0.0
  %910 = vmatprep.subr.mxu0 0.0
  %911 = vmatpush1.msra.mxu0 0.0
  %912 = vmatprep.subr.mxu0 0.0
  %913 = vmatpush1.msra.mxu0 0.0
  %914 = vmatprep.subr.mxu0 0.0
  %915 = vmatpush1.msra.mxu0 0.0
  %916 = vmatprep.subr.mxu0 0.0
  %917 = vmatpush1.msra.mxu0 0.0
  %918 = vmatprep.subr.mxu0 0.0
  %919 = vmatpush1.msra.mxu0 0.0
  %920 = vmatprep.subr.mxu0 0.0
  %921 = vmatpush1.msra.mxu0 0.0
  %922 = vmatprep.subr.mxu0 0.0
  %923 = vmatpush1.msra.mxu0 0.0
  %924 = vmatprep.subr.mxu0 0.0
  %925 = vmatpush1.msra.mxu0 0.0
  %926 = vmatprep.subr.mxu0 0.0
  %927 = vmatpush1.msra.mxu0 0.0
  %928 = vmatprep.mubr.f32.mxu0 0.0
  %v929 = vand.u32 %v353, 4294901760
  %930 = vmatmul.mubr.f32.gmra.mrb[0].mxu0 %v929
  %v931 = vpop.f32.mrb[0].mxu0
  %v932 = vadd.f32 %v850, %v931
  %v933 = vpop.f32.mrb[0].mxu0
  %v934 = vadd.f32 %v852, %v933
  %935 = vdwg.mxu0
  %v936 = vand.u32 %v333, 4294901760
  %937 = vmatprep.subr.mxu0 %v936
  %v938 = vand.u32 %v332, 4294901760
  %939 = vmatpush1.msra.mxu0 %v938
  %v940 = vand.u32 %v337, 4294901760
  %941 = vmatprep.subr.mxu0 %v940
  %v942 = vand.u32 %v336, 4294901760
  %943 = vmatpush1.msra.mxu0 %v942
  %v944 = vand.u32 %v341, 4294901760
  %945 = vmatprep.subr.mxu0 %v944
  %v946 = vand.u32 %v340, 4294901760
  %947 = vmatpush1.msra.mxu0 %v946
  %v948 = vand.u32 %v345, 4294901760
  %949 = vmatprep.subr.mxu0 %v948
  %v950 = vand.u32 %v344, 4294901760
  %951 = vmatpush1.msra.mxu0 %v950
  %v952 = vand.u32 %v365, 4294901760
  %953 = vmatprep.subr.mxu0 %v952
  %v954 = vand.u32 %v362, 4294901760
  %955 = vmatpush1.msra.mxu0 %v954
  %956 = vmatprep.subr.mxu0 0.0
  %957 = vmatpush1.msra.mxu0 0.0
  %958 = vmatprep.subr.mxu0 0.0
  %959 = vmatpush1.msra.mxu0 0.0
  %960 = vmatprep.subr.mxu0 0.0
  %961 = vmatpush1.msra.mxu0 0.0
  %962 = vmatprep.subr.mxu0 0.0
  %963 = vmatpush1.msra.mxu0 0.0
  %964 = vmatprep.subr.mxu0 0.0
  %965 = vmatpush1.msra.mxu0 0.0
  %966 = vmatprep.subr.mxu0 0.0
  %967 = vmatpush1.msra.mxu0 0.0
  %968 = vmatprep.subr.mxu0 0.0
  %969 = vmatpush1.msra.mxu0 0.0
  %970 = vmatprep.subr.mxu0 0.0
  %971 = vmatpush1.msra.mxu0 0.0
  %972 = vmatprep.subr.mxu0 0.0
  %973 = vmatpush1.msra.mxu0 0.0
  %974 = vmatprep.subr.mxu0 0.0
  %975 = vmatpush1.msra.mxu0 0.0
  %976 = vmatprep.subr.mxu0 0.0
  %977 = vmatpush1.msra.mxu0 0.0
  %978 = vmatprep.subr.mxu0 0.0
  %979 = vmatpush1.msra.mxu0 0.0
  %980 = vmatprep.subr.mxu0 0.0
  %981 = vmatpush1.msra.mxu0 0.0
  %982 = vmatprep.subr.mxu0 0.0
  %983 = vmatpush1.msra.mxu0 0.0
  %984 = vmatprep.subr.mxu0 0.0
  %985 = vmatpush1.msra.mxu0 0.0
  %986 = vmatprep.subr.mxu0 0.0
  %987 = vmatpush1.msra.mxu0 0.0
  %988 = vmatprep.subr.mxu0 0.0
  %989 = vmatpush1.msra.mxu0 0.0
  %990 = vmatprep.subr.mxu0 0.0
  %991 = vmatpush1.msra.mxu0 0.0
  %992 = vmatprep.subr.mxu0 0.0
  %993 = vmatpush1.msra.mxu0 0.0
  %994 = vmatprep.subr.mxu0 0.0
  %995 = vmatpush1.msra.mxu0 0.0
  %996 = vmatprep.subr.mxu0 0.0
  %997 = vmatpush1.msra.mxu0 0.0
  %998 = vmatprep.subr.mxu0 0.0
  %999 = vmatpush1.msra.mxu0 0.0
  %1000 = vmatprep.subr.mxu0 0.0
  %1001 = vmatpush1.msra.mxu0 0.0
  %1002 = vmatprep.subr.mxu0 0.0
  %1003 = vmatpush1.msra.mxu0 0.0
  %1004 = vmatprep.subr.mxu0 0.0
  %1005 = vmatpush1.msra.mxu0 0.0
  %1006 = vmatprep.subr.mxu0 0.0
  %1007 = vmatpush1.msra.mxu0 0.0
  %1008 = vmatprep.subr.mxu0 0.0
  %1009 = vmatpush1.msra.mxu0 0.0
  %1010 = vmatprep.mubr.f32.mxu0 0.0
  %v1011 = vand.u32 %v353, 4294901760
  %v1012 = vsub.f32 %v353, %v1011
  %v1013 = vand.u32 %v1012, 4294901760
  %v1014 = vsub.f32 %v1012, %v1013
  %v1015 = vand.u32 %v1014, 4294901760
  %1016 = vmatmul.mubr.f32.gmra.mrb[0].mxu0 %v1015
  %v1017 = vpop.f32.mrb[0].mxu0
  %v1018 = vadd.f32 %v349, %v1017
  %v1019 = vpop.f32.mrb[0].mxu0
  %v1020 = vadd.f32 %v349, %v1019
  %1021 = vdwg.mxu0
  %v1022 = vand.u32 %v333, 4294901760
  %v1023 = vsub.f32 %v333, %v1022
  %v1024 = vand.u32 %v1023, 4294901760
  %v1025 = vsub.f32 %v1023, %v1024
  %v1026 = vand.u32 %v1025, 4294901760
  %1027 = vmatprep.subr.mxu0 %v1026
  %v1028 = vand.u32 %v332, 4294901760
  %v1029 = vsub.f32 %v332, %v1028
  %v1030 = vand.u32 %v1029, 4294901760
  %v1031 = vsub.f32 %v1029, %v1030
  %v1032 = vand.u32 %v1031, 4294901760
  %1033 = vmatpush1.msra.mxu0 %v1032
  %v1034 = vand.u32 %v337, 4294901760
  %v1035 = vsub.f32 %v337, %v1034
  %v1036 = vand.u32 %v1035, 4294901760
  %v1037 = vsub.f32 %v1035, %v1036
  %v1038 = vand.u32 %v1037, 4294901760
  %1039 = vmatprep.subr.mxu0 %v1038
  %v1040 = vand.u32 %v336, 4294901760
  %v1041 = vsub.f32 %v336, %v1040
  %v1042 = vand.u32 %v1041, 4294901760
  %v1043 = vsub.f32 %v1041, %v1042
  %v1044 = vand.u32 %v1043, 4294901760
  %1045 = vmatpush1.msra.mxu0 %v1044
  %v1046 = vand.u32 %v341, 4294901760
  %v1047 = vsub.f32 %v341, %v1046
  %v1048 = vand.u32 %v1047, 4294901760
  %v1049 = vsub.f32 %v1047, %v1048
  %v1050 = vand.u32 %v1049, 4294901760
  %1051 = vmatprep.subr.mxu0 %v1050
  %v1052 = vand.u32 %v340, 4294901760
  %v1053 = vsub.f32 %v340, %v1052
  %v1054 = vand.u32 %v1053, 4294901760
  %v1055 = vsub.f32 %v1053, %v1054
  %v1056 = vand.u32 %v1055, 4294901760
  %1057 = vmatpush1.msra.mxu0 %v1056
  %v1058 = vand.u32 %v345, 4294901760
  %v1059 = vsub.f32 %v345, %v1058
  %v1060 = vand.u32 %v1059, 4294901760
  %v1061 = vsub.f32 %v1059, %v1060
  %v1062 = vand.u32 %v1061, 4294901760
  %1063 = vmatprep.subr.mxu0 %v1062
  %v1064 = vand.u32 %v344, 4294901760
  %v1065 = vsub.f32 %v344, %v1064
  %v1066 = vand.u32 %v1065, 4294901760
  %v1067 = vsub.f32 %v1065, %v1066
  %v1068 = vand.u32 %v1067, 4294901760
  %1069 = vmatpush1.msra.mxu0 %v1068
  %v1070 = vand.u32 %v365, 4294901760
  %v1071 = vsub.f32 %v365, %v1070
  %v1072 = vand.u32 %v1071, 4294901760
  %v1073 = vsub.f32 %v1071, %v1072
  %v1074 = vand.u32 %v1073, 4294901760
  %1075 = vmatprep.subr.mxu0 %v1074
  %v1076 = vand.u32 %v362, 4294901760
  %v1077 = vsub.f32 %v362, %v1076
  %v1078 = vand.u32 %v1077, 4294901760
  %v1079 = vsub.f32 %v1077, %v1078
  %v1080 = vand.u32 %v1079, 4294901760
  %1081 = vmatpush1.msra.mxu0 %v1080
  %1082 = vmatprep.subr.mxu0 0.0
  %1083 = vmatpush1.msra.mxu0 0.0
  %1084 = vmatprep.subr.mxu0 0.0
  %1085 = vmatpush1.msra.mxu0 0.0
  %1086 = vmatprep.subr.mxu0 0.0
  %1087 = vmatpush1.msra.mxu0 0.0
  %1088 = vmatprep.subr.mxu0 0.0
  %1089 = vmatpush1.msra.mxu0 0.0
  %1090 = vmatprep.subr.mxu0 0.0
  %1091 = vmatpush1.msra.mxu0 0.0
  %1092 = vmatprep.subr.mxu0 0.0
  %1093 = vmatpush1.msra.mxu0 0.0
  %1094 = vmatprep.subr.mxu0 0.0
  %1095 = vmatpush1.msra.mxu0 0.0
  %1096 = vmatprep.subr.mxu0 0.0
  %1097 = vmatpush1.msra.mxu0 0.0
  %1098 = vmatprep.subr.mxu0 0.0
  %1099 = vmatpush1.msra.mxu0 0.0
  %1100 = vmatprep.subr.mxu0 0.0
  %1101 = vmatpush1.msra.mxu0 0.0
  %1102 = vmatprep.subr.mxu0 0.0
  %1103 = vmatpush1.msra.mxu0 0.0
  %1104 = vmatprep.subr.mxu0 0.0
  %1105 = vmatpush1.msra.mxu0 0.0
  %1106 = vmatprep.subr.mxu0 0.0
  %1107 = vmatpush1.msra.mxu0 0.0
  %1108 = vmatprep.subr.mxu0 0.0
  %1109 = vmatpush1.msra.mxu0 0.0
  %1110 = vmatprep.subr.mxu0 0.0
  %1111 = vmatpush1.msra.mxu0 0.0
  %1112 = vmatprep.subr.mxu0 0.0
  %1113 = vmatpush1.msra.mxu0 0.0
  %1114 = vmatprep.subr.mxu0 0.0
  %1115 = vmatpush1.msra.mxu0 0.0
  %1116 = vmatprep.subr.mxu0 0.0
  %1117 = vmatpush1.msra.mxu0 0.0
  %1118 = vmatprep.subr.mxu0 0.0
  %1119 = vmatpush1.msra.mxu0 0.0
  %1120 = vmatprep.subr.mxu0 0.0
  %1121 = vmatpush1.msra.mxu0 0.0
  %1122 = vmatprep.subr.mxu0 0.0
  %1123 = vmatpush1.msra.mxu0 0.0
  %1124 = vmatprep.subr.mxu0 0.0
  %1125 = vmatpush1.msra.mxu0 0.0
  %1126 = vmatprep.subr.mxu0 0.0
  %1127 = vmatpush1.msra.mxu0 0.0
  %1128 = vmatprep.subr.mxu0 0.0
  %1129 = vmatpush1.msra.mxu0 0.0
  %1130 = vmatprep.subr.mxu0 0.0
  %1131 = vmatpush1.msra.mxu0 0.0
  %1132 = vmatprep.subr.mxu0 0.0
  %1133 = vmatpush1.msra.mxu0 0.0
  %1134 = vmatprep.subr.mxu0 0.0
  %1135 = vmatpush1.msra.mxu0 0.0
  %1136 = vmatprep.mubr.f32.mxu0 0.0
  %v1137 = vand.u32 %v353, 4294901760
  %1138 = vmatmul.mubr.f32.gmra.mrb[0].mxu0 %v1137
  %v1139 = vpop.f32.mrb[0].mxu0
  %v1140 = vadd.f32 %v1018, %v1139
  %v1141 = vpop.f32.mrb[0].mxu0
  %v1142 = vadd.f32 %v1020, %v1141
  %1143 = vdwg.mxu0
  %v1144 = vand.u32 %v333, 4294901760
  %v1145 = vsub.f32 %v333, %v1144
  %1146 = vmatprep.subr.mxu0 %v1145
  %v1147 = vand.u32 %v332, 4294901760
  %v1148 = vsub.f32 %v332, %v1147
  %1149 = vmatpush1.msra.mxu0 %v1148
  %v1150 = vand.u32 %v337, 4294901760
  %v1151 = vsub.f32 %v337, %v1150
  %1152 = vmatprep.subr.mxu0 %v1151
  %v1153 = vand.u32 %v336, 4294901760
  %v1154 = vsub.f32 %v336, %v1153
  %1155 = vmatpush1.msra.mxu0 %v1154
  %v1156 = vand.u32 %v341, 4294901760
  %v1157 = vsub.f32 %v341, %v1156
  %1158 = vmatprep.subr.mxu0 %v1157
  %v1159 = vand.u32 %v340, 4294901760
  %v1160 = vsub.f32 %v340, %v1159
  %1161 = vmatpush1.msra.mxu0 %v1160
  %v1162 = vand.u32 %v345, 4294901760
  %v1163 = vsub.f32 %v345, %v1162
  %1164 = vmatprep.subr.mxu0 %v1163
  %v1165 = vand.u32 %v344, 4294901760
  %v1166 = vsub.f32 %v344, %v1165
  %1167 = vmatpush1.msra.mxu0 %v1166
  %v1168 = vand.u32 %v365, 4294901760
  %v1169 = vsub.f32 %v365, %v1168
  %1170 = vmatprep.subr.mxu0 %v1169
  %v1171 = vand.u32 %v362, 4294901760
  %v1172 = vsub.f32 %v362, %v1171
  %1173 = vmatpush1.msra.mxu0 %v1172
  %1174 = vmatprep.subr.mxu0 0.0
  %1175 = vmatpush1.msra.mxu0 0.0
  %1176 = vmatprep.subr.mxu0 0.0
  %1177 = vmatpush1.msra.mxu0 0.0
  %1178 = vmatprep.subr.mxu0 0.0
  %1179 = vmatpush1.msra.mxu0 0.0
  %1180 = vmatprep.subr.mxu0 0.0
  %1181 = vmatpush1.msra.mxu0 0.0
  %1182 = vmatprep.subr.mxu0 0.0
  %1183 = vmatpush1.msra.mxu0 0.0
  %1184 = vmatprep.subr.mxu0 0.0
  %1185 = vmatpush1.msra.mxu0 0.0
  %1186 = vmatprep.subr.mxu0 0.0
  %1187 = vmatpush1.msra.mxu0 0.0
  %1188 = vmatprep.subr.mxu0 0.0
  %1189 = vmatpush1.msra.mxu0 0.0
  %1190 = vmatprep.subr.mxu0 0.0
  %1191 = vmatpush1.msra.mxu0 0.0
  %1192 = vmatprep.subr.mxu0 0.0
  %1193 = vmatpush1.msra.mxu0 0.0
  %1194 = vmatprep.subr.mxu0 0.0
  %1195 = vmatpush1.msra.mxu0 0.0
  %1196 = vmatprep.subr.mxu0 0.0
  %1197 = vmatpush1.msra.mxu0 0.0
  %1198 = vmatprep.subr.mxu0 0.0
  %1199 = vmatpush1.msra.mxu0 0.0
  %1200 = vmatprep.subr.mxu0 0.0
  %1201 = vmatpush1.msra.mxu0 0.0
  %1202 = vmatprep.subr.mxu0 0.0
  %1203 = vmatpush1.msra.mxu0 0.0
  %1204 = vmatprep.subr.mxu0 0.0
  %1205 = vmatpush1.msra.mxu0 0.0
  %1206 = vmatprep.subr.mxu0 0.0
  %1207 = vmatpush1.msra.mxu0 0.0
  %1208 = vmatprep.subr.mxu0 0.0
  %1209 = vmatpush1.msra.mxu0 0.0
  %1210 = vmatprep.subr.mxu0 0.0
  %1211 = vmatpush1.msra.mxu0 0.0
  %1212 = vmatprep.subr.mxu0 0.0
  %1213 = vmatpush1.msra.mxu0 0.0
  %1214 = vmatprep.subr.mxu0 0.0
  %1215 = vmatpush1.msra.mxu0 0.0
  %1216 = vmatprep.subr.mxu0 0.0
  %1217 = vmatpush1.msra.mxu0 0.0
  %1218 = vmatprep.subr.mxu0 0.0
  %1219 = vmatpush1.msra.mxu0 0.0
  %1220 = vmatprep.subr.mxu0 0.0
  %1221 = vmatpush1.msra.mxu0 0.0
  %1222 = vmatprep.subr.mxu0 0.0
  %1223 = vmatpush1.msra.mxu0 0.0
  %1224 = vmatprep.subr.mxu0 0.0
  %1225 = vmatpush1.msra.mxu0 0.0
  %1226 = vmatprep.subr.mxu0 0.0
  %1227 = vmatpush1.msra.mxu0 0.0
  %1228 = vmatprep.mubr.f32.mxu0 0.0
  %v1229 = vand.u32 %v353, 4294901760
  %v1230 = vsub.f32 %v353, %v1229
  %1231 = vmatmul.mubr.f32.gmra.mrb[0].mxu0 %v1230
  %v1232 = vpop.f32.mrb[0].mxu0
  %v1233 = vadd.f32 %v1140, %v1232
  %v1234 = vpop.f32.mrb[0].mxu0
  %v1235 = vadd.f32 %v1142, %v1234
  %1236 = vdwg.mxu0
  %v1237 = vand.u32 %v333, 4294901760
  %1238 = vmatprep.subr.mxu0 %v1237
  %v1239 = vand.u32 %v332, 4294901760
  %1240 = vmatpush1.msra.mxu0 %v1239
  %v1241 = vand.u32 %v337, 4294901760
  %1242 = vmatprep.subr.mxu0 %v1241
  %v1243 = vand.u32 %v336, 4294901760
  %1244 = vmatpush1.msra.mxu0 %v1243
  %v1245 = vand.u32 %v341, 4294901760
  %1246 = vmatprep.subr.mxu0 %v1245
  %v1247 = vand.u32 %v340, 4294901760
  %1248 = vmatpush1.msra.mxu0 %v1247
  %v1249 = vand.u32 %v345, 4294901760
  %1250 = vmatprep.subr.mxu0 %v1249
  %v1251 = vand.u32 %v344, 4294901760
  %1252 = vmatpush1.msra.mxu0 %v1251
  %v1253 = vand.u32 %v365, 4294901760
  %1254 = vmatprep.subr.mxu0 %v1253
  %v1255 = vand.u32 %v362, 4294901760
  %1256 = vmatpush1.msra.mxu0 %v1255
  %1257 = vmatprep.subr.mxu0 0.0
  %1258 = vmatpush1.msra.mxu0 0.0
  %1259 = vmatprep.subr.mxu0 0.0
  %1260 = vmatpush1.msra.mxu0 0.0
  %1261 = vmatprep.subr.mxu0 0.0
  %1262 = vmatpush1.msra.mxu0 0.0
  %1263 = vmatprep.subr.mxu0 0.0
  %1264 = vmatpush1.msra.mxu0 0.0
  %1265 = vmatprep.subr.mxu0 0.0
  %1266 = vmatpush1.msra.mxu0 0.0
  %1267 = vmatprep.subr.mxu0 0.0
  %1268 = vmatpush1.msra.mxu0 0.0
  %1269 = vmatprep.subr.mxu0 0.0
  %1270 = vmatpush1.msra.mxu0 0.0
  %1271 = vmatprep.subr.mxu0 0.0
  %1272 = vmatpush1.msra.mxu0 0.0
  %1273 = vmatprep.subr.mxu0 0.0
  %1274 = vmatpush1.msra.mxu0 0.0
  %1275 = vmatprep.subr.mxu0 0.0
  %1276 = vmatpush1.msra.mxu0 0.0
  %1277 = vmatprep.subr.mxu0 0.0
  %1278 = vmatpush1.msra.mxu0 0.0
  %1279 = vmatprep.subr.mxu0 0.0
  %1280 = vmatpush1.msra.mxu0 0.0
  %1281 = vmatprep.subr.mxu0 0.0
  %1282 = vmatpush1.msra.mxu0 0.0
  %1283 = vmatprep.subr.mxu0 0.0
  %1284 = vmatpush1.msra.mxu0 0.0
  %1285 = vmatprep.subr.mxu0 0.0
  %1286 = vmatpush1.msra.mxu0 0.0
  %1287 = vmatprep.subr.mxu0 0.0
  %1288 = vmatpush1.msra.mxu0 0.0
  %1289 = vmatprep.subr.mxu0 0.0
  %1290 = vmatpush1.msra.mxu0 0.0
  %1291 = vmatprep.subr.mxu0 0.0
  %1292 = vmatpush1.msra.mxu0 0.0
  %1293 = vmatprep.subr.mxu0 0.0
  %1294 = vmatpush1.msra.mxu0 0.0
  %1295 = vmatprep.subr.mxu0 0.0
  %1296 = vmatpush1.msra.mxu0 0.0
  %1297 = vmatprep.subr.mxu0 0.0
  %1298 = vmatpush1.msra.mxu0 0.0
  %1299 = vmatprep.subr.mxu0 0.0
  %1300 = vmatpush1.msra.mxu0 0.0
  %1301 = vmatprep.subr.mxu0 0.0
  %1302 = vmatpush1.msra.mxu0 0.0
  %1303 = vmatprep.subr.mxu0 0.0
  %1304 = vmatpush1.msra.mxu0 0.0
  %1305 = vmatprep.subr.mxu0 0.0
  %1306 = vmatpush1.msra.mxu0 0.0
  %1307 = vmatprep.subr.mxu0 0.0
  %1308 = vmatpush1.msra.mxu0 0.0
  %1309 = vmatprep.subr.mxu0 0.0
  %1310 = vmatpush1.msra.mxu0 0.0
  %1311 = vmatprep.mubr.f32.mxu0 0.0
  %v1312 = vand.u32 %v353, 4294901760
  %v1313 = vsub.f32 %v353, %v1312
  %v1314 = vand.u32 %v1313, 4294901760
  %1315 = vmatmul.mubr.f32.gmra.mrb[0].mxu0 %v1314
  %v1316 = vpop.f32.mrb[0].mxu0
  %v1317 = vadd.f32 %v1233, %v1316
  %v1318 = vpop.f32.mrb[0].mxu0
  %v1319 = vadd.f32 %v1235, %v1318
  %1320 = vdwg.mxu0
  %v1321 = vand.u32 %v333, 4294901760
  %v1322 = vsub.f32 %v333, %v1321
  %v1323 = vand.u32 %v1322, 4294901760
  %1324 = vmatprep.subr.mxu0 %v1323
  %v1325 = vand.u32 %v332, 4294901760
  %v1326 = vsub.f32 %v332, %v1325
  %v1327 = vand.u32 %v1326, 4294901760
  %1328 = vmatpush1.msra.mxu0 %v1327
  %v1329 = vand.u32 %v337, 4294901760
  %v1330 = vsub.f32 %v337, %v1329
  %v1331 = vand.u32 %v1330, 4294901760
  %1332 = vmatprep.subr.mxu0 %v1331
  %v1333 = vand.u32 %v336, 4294901760
  %v1334 = vsub.f32 %v336, %v1333
  %v1335 = vand.u32 %v1334, 4294901760
  %1336 = vmatpush1.msra.mxu0 %v1335
  %v1337 = vand.u32 %v341, 4294901760
  %v1338 = vsub.f32 %v341, %v1337
  %v1339 = vand.u32 %v1338, 4294901760
  %1340 = vmatprep.subr.mxu0 %v1339
  %v1341 = vand.u32 %v340, 4294901760
  %v1342 = vsub.f32 %v340, %v1341
  %v1343 = vand.u32 %v1342, 4294901760
  %1344 = vmatpush1.msra.mxu0 %v1343
  %v1345 = vand.u32 %v345, 4294901760
  %v1346 = vsub.f32 %v345, %v1345
  %v1347 = vand.u32 %v1346, 4294901760
  %1348 = vmatprep.subr.mxu0 %v1347
  %v1349 = vand.u32 %v344, 4294901760
  %v1350 = vsub.f32 %v344, %v1349
  %v1351 = vand.u32 %v1350, 4294901760
  %1352 = vmatpush1.msra.mxu0 %v1351
  %v1353 = vand.u32 %v365, 4294901760
  %v1354 = vsub.f32 %v365, %v1353
  %v1355 = vand.u32 %v1354, 4294901760
  %1356 = vmatprep.subr.mxu0 %v1355
  %v1357 = vand.u32 %v362, 4294901760
  %v1358 = vsub.f32 %v362, %v1357
  %v1359 = vand.u32 %v1358, 4294901760
  %1360 = vmatpush1.msra.mxu0 %v1359
  %1361 = vmatprep.subr.mxu0 0.0
  %1362 = vmatpush1.msra.mxu0 0.0
  %1363 = vmatprep.subr.mxu0 0.0
  %1364 = vmatpush1.msra.mxu0 0.0
  %1365 = vmatprep.subr.mxu0 0.0
  %1366 = vmatpush1.msra.mxu0 0.0
  %1367 = vmatprep.subr.mxu0 0.0
  %1368 = vmatpush1.msra.mxu0 0.0
  %1369 = vmatprep.subr.mxu0 0.0
  %1370 = vmatpush1.msra.mxu0 0.0
  %1371 = vmatprep.subr.mxu0 0.0
  %1372 = vmatpush1.msra.mxu0 0.0
  %1373 = vmatprep.subr.mxu0 0.0
  %1374 = vmatpush1.msra.mxu0 0.0
  %1375 = vmatprep.subr.mxu0 0.0
  %1376 = vmatpush1.msra.mxu0 0.0
  %1377 = vmatprep.subr.mxu0 0.0
  %1378 = vmatpush1.msra.mxu0 0.0
  %1379 = vmatprep.subr.mxu0 0.0
  %1380 = vmatpush1.msra.mxu0 0.0
  %1381 = vmatprep.subr.mxu0 0.0
  %1382 = vmatpush1.msra.mxu0 0.0
  %1383 = vmatprep.subr.mxu0 0.0
  %1384 = vmatpush1.msra.mxu0 0.0
  %1385 = vmatprep.subr.mxu0 0.0
  %1386 = vmatpush1.msra.mxu0 0.0
  %1387 = vmatprep.subr.mxu0 0.0
  %1388 = vmatpush1.msra.mxu0 0.0
  %1389 = vmatprep.subr.mxu0 0.0
  %1390 = vmatpush1.msra.mxu0 0.0
  %1391 = vmatprep.subr.mxu0 0.0
  %1392 = vmatpush1.msra.mxu0 0.0
  %1393 = vmatprep.subr.mxu0 0.0
  %1394 = vmatpush1.msra.mxu0 0.0
  %1395 = vmatprep.subr.mxu0 0.0
  %1396 = vmatpush1.msra.mxu0 0.0
  %1397 = vmatprep.subr.mxu0 0.0
  %1398 = vmatpush1.msra.mxu0 0.0
  %1399 = vmatprep.subr.mxu0 0.0
  %1400 = vmatpush1.msra.mxu0 0.0
  %1401 = vmatprep.subr.mxu0 0.0
  %1402 = vmatpush1.msra.mxu0 0.0
  %1403 = vmatprep.subr.mxu0 0.0
  %1404 = vmatpush1.msra.mxu0 0.0
  %1405 = vmatprep.subr.mxu0 0.0
  %1406 = vmatpush1.msra.mxu0 0.0
  %1407 = vmatprep.subr.mxu0 0.0
  %1408 = vmatpush1.msra.mxu0 0.0
  %1409 = vmatprep.subr.mxu0 0.0
  %1410 = vmatpush1.msra.mxu0 0.0
  %1411 = vmatprep.subr.mxu0 0.0
  %1412 = vmatpush1.msra.mxu0 0.0
  %1413 = vmatprep.subr.mxu0 0.0
  %1414 = vmatpush1.msra.mxu0 0.0
  %1415 = vmatprep.mubr.f32.mxu0 0.0
  %v1416 = vand.u32 %v353, 4294901760
  %1417 = vmatmul.mubr.f32.gmra.mrb[0].mxu0 %v1416
  %v1418 = vpop.f32.mrb[0].mxu0
  %v1419 = vadd.f32 %v1317, %v1418
  %v1420 = vpop.f32.mrb[0].mxu0
  %v1421 = vadd.f32 %v1319, %v1420
  %1422 = vdwg.mxu0
  %v1423 = vand.u32 %v333, 4294901760
  %1424 = vmatprep.subr.mxu0 %v1423
  %v1425 = vand.u32 %v332, 4294901760
  %1426 = vmatpush1.msra.mxu0 %v1425
  %v1427 = vand.u32 %v337, 4294901760
  %1428 = vmatprep.subr.mxu0 %v1427
  %v1429 = vand.u32 %v336, 4294901760
  %1430 = vmatpush1.msra.mxu0 %v1429
  %v1431 = vand.u32 %v341, 4294901760
  %1432 = vmatprep.subr.mxu0 %v1431
  %v1433 = vand.u32 %v340, 4294901760
  %1434 = vmatpush1.msra.mxu0 %v1433
  %v1435 = vand.u32 %v345, 4294901760
  %1436 = vmatprep.subr.mxu0 %v1435
  %v1437 = vand.u32 %v344, 4294901760
  %1438 = vmatpush1.msra.mxu0 %v1437
  %v1439 = vand.u32 %v365, 4294901760
  %1440 = vmatprep.subr.mxu0 %v1439
  %v1441 = vand.u32 %v362, 4294901760
  %1442 = vmatpush1.msra.mxu0 %v1441
  %1443 = vmatprep.subr.mxu0 0.0
  %1444 = vmatpush1.msra.mxu0 0.0
  %1445 = vmatprep.subr.mxu0 0.0
  %1446 = vmatpush1.msra.mxu0 0.0
  %1447 = vmatprep.subr.mxu0 0.0
  %1448 = vmatpush1.msra.mxu0 0.0
  %1449 = vmatprep.subr.mxu0 0.0
  %1450 = vmatpush1.msra.mxu0 0.0
  %1451 = vmatprep.subr.mxu0 0.0
  %1452 = vmatpush1.msra.mxu0 0.0
  %1453 = vmatprep.subr.mxu0 0.0
  %1454 = vmatpush1.msra.mxu0 0.0
  %1455 = vmatprep.subr.mxu0 0.0
  %1456 = vmatpush1.msra.mxu0 0.0
  %1457 = vmatprep.subr.mxu0 0.0
  %1458 = vmatpush1.msra.mxu0 0.0
  %1459 = vmatprep.subr.mxu0 0.0
  %1460 = vmatpush1.msra.mxu0 0.0
  %1461 = vmatprep.subr.mxu0 0.0
  %1462 = vmatpush1.msra.mxu0 0.0
  %1463 = vmatprep.subr.mxu0 0.0
  %1464 = vmatpush1.msra.mxu0 0.0
  %1465 = vmatprep.subr.mxu0 0.0
  %1466 = vmatpush1.msra.mxu0 0.0
  %1467 = vmatprep.subr.mxu0 0.0
  %1468 = vmatpush1.msra.mxu0 0.0
  %1469 = vmatprep.subr.mxu0 0.0
  %1470 = vmatpush1.msra.mxu0 0.0
  %1471 = vmatprep.subr.mxu0 0.0
  %1472 = vmatpush1.msra.mxu0 0.0
  %1473 = vmatprep.subr.mxu0 0.0
  %1474 = vmatpush1.msra.mxu0 0.0
  %1475 = vmatprep.subr.mxu0 0.0
  %1476 = vmatpush1.msra.mxu0 0.0
  %1477 = vmatprep.subr.mxu0 0.0
  %1478 = vmatpush1.msra.mxu0 0.0
  %1479 = vmatprep.subr.mxu0 0.0
  %1480 = vmatpush1.msra.mxu0 0.0
  %1481 = vmatprep.subr.mxu0 0.0
  %1482 = vmatpush1.msra.mxu0 0.0
  %1483 = vmatprep.subr.mxu0 0.0
  %1484 = vmatpush1.msra.mxu0 0.0
  %1485 = vmatprep.subr.mxu0 0.0
  %1486 = vmatpush1.msra.mxu0 0.0
  %1487 = vmatprep.subr.mxu0 0.0
  %1488 = vmatpush1.msra.mxu0 0.0
  %1489 = vmatprep.subr.mxu0 0.0
  %1490 = vmatpush1.msra.mxu0 0.0
  %1491 = vmatprep.subr.mxu0 0.0
  %1492 = vmatpush1.msra.mxu0 0.0
  %1493 = vmatprep.subr.mxu0 0.0
  %1494 = vmatpush1.msra.mxu0 0.0
  %1495 = vmatprep.subr.mxu0 0.0
  %1496 = vmatpush1.msra.mxu0 0.0
  %1497 = vmatprep.mubr.f32.mxu0 0.0
  %v1498 = vand.u32 %v353, 4294901760
  %1499 = vmatmul.mubr.f32.gmra.mrb[0].mxu0 %v1498
  %v1500 = vpop.f32.mrb[0].mxu0
  %v1501 = vadd.f32 %v1419, %v1500
  %v1502 = vpop.f32.mrb[0].mxu0
  %v1503 = vadd.f32 %v1421, %v1502
  %1504 = vdwg.mxu0
  %1505 = vst [vmem:[%s5] sm:$0xff] %v932
  %1506 = vst [vmem:[%s5 + $0x8] sm:$0xff] %v934
  %1507 = vst [vmem:[%s5 + $0x10] sm:$0xff] %v1501
  %1508 = vst [vmem:[%s5 + $0x18] sm:$0xff] %v1503
  %v1509 = vmax.f32 %v932, 0.0
  %v1510 = vmax.f32 %v934, 0.0
  %v1511 = vmax.f32 %v1501, 0.0
  %v1512 = vmax.f32 %v1503, 0.0
  %v1513 = vld [vmem:[%s3] sm:$0xff]
  %v1514 = vld [vmem:[%s4] sm:$0xff]
  %1515 = vrot.lane.b32.xlu0 %v1509, 17
  %v1516 = vpop.permute.xlu0 %1515
  %1517 = vrot.lane.b32.xlu0 %v1510, 17
  %v1518 = vpop.permute.xlu0 %1517
  %1519 = vrot.lane.b32.xlu0 %v1511, 17
  %v1520 = vpop.permute.xlu0 %1519
  %1521 = vrot.lane.b32.xlu0 %v1512, 17
  %v1522 = vpop.permute.xlu0 %1521
  %v1523 = vsel %vm153, %v1520, %v1522
  %v1524 = vsel %vm153, %v1518, %v1520
  %v1525 = vsel %vm153, %v1516, %v1518
  %v1526 = vsel %vm153, %v1522, %v1516
  %v1527 = vmul.f32 %v1526, %v55
  %v1528 = vmul.f32 %v1525, %v56
  %v1529 = vmul.f32 %v1524, %v57
  %v1530 = vmul.f32 %v1523, %v58
  %1531 = vrot.lane.b32.xlu0 %v1509, 16
  %v1532 = vpop.permute.xlu0 %1531
  %1533 = vrot.lane.b32.xlu0 %v1510, 16
  %v1534 = vpop.permute.xlu0 %1533
  %1535 = vrot.lane.b32.xlu0 %v1511, 16
  %v1536 = vpop.permute.xlu0 %1535
  %1537 = vrot.lane.b32.xlu0 %v1512, 16
  %v1538 = vpop.permute.xlu0 %1537
  %v1539 = vsel %vm170, %v1536, %v1538
  %v1540 = vsel %vm170, %v1534, %v1536
  %v1541 = vsel %vm170, %v1532, %v1534
  %v1542 = vsel %vm170, %v1538, %v1532
  %v1543 = vmul.f32 %v1542, %v63
  %v1544 = vmul.f32 %v1541, %v64
  %v1545 = vmul.f32 %v1540, %v65
  %v1546 = vmul.f32 %v1539, %v66
  %1547 = vrot.lane.b32.xlu0 %v1509, 15
  %v1548 = vpop.permute.xlu0 %1547
  %1549 = vrot.lane.b32.xlu0 %v1510, 15
  %v1550 = vpop.permute.xlu0 %1549
  %1551 = vrot.lane.b32.xlu0 %v1511, 15
  %v1552 = vpop.permute.xlu0 %1551
  %1553 = vrot.lane.b32.xlu0 %v1512, 15
  %v1554 = vpop.permute.xlu0 %1553
  %v1555 = vsel %vm187, %v1552, %v1554
  %v1556 = vsel %vm187, %v1550, %v1552
  %v1557 = vsel %vm187, %v1548, %v1550
  %v1558 = vsel %vm187, %v1554, %v1548
  %v1559 = vmul.f32 %v1558, %v79
  %v1560 = vmul.f32 %v1557, %v80
  %v1561 = vmul.f32 %v1556, %v81
  %v1562 = vmul.f32 %v1555, %v82
  %1563 = vrot.lane.b32.xlu0 %v1509, 1
  %v1564 = vpop.permute.xlu0 %1563
  %1565 = vrot.lane.b32.xlu0 %v1510, 1
  %v1566 = vpop.permute.xlu0 %1565
  %1567 = vrot.lane.b32.xlu0 %v1511, 1
  %v1568 = vpop.permute.xlu0 %1567
  %1569 = vrot.lane.b32.xlu0 %v1512, 1
  %v1570 = vpop.permute.xlu0 %1569
  %v1571 = vsel %vm204, %v1568, %v1570
  %v1572 = vsel %vm204, %v1566, %v1568
  %v1573 = vsel %vm204, %v1564, %v1566
  %v1574 = vsel %vm204, %v1570, %v1564
  %v1575 = vmul.f32 %v1574, %v87
  %v1576 = vmul.f32 %v1573, %v88
  %v1577 = vmul.f32 %v1572, %v89
  %v1578 = vmul.f32 %v1571, %v90
  %1579 = vrot.lane.b32.xlu0 %v1509, 127
  %v1580 = vpop.permute.xlu0 %1579
  %1581 = vrot.lane.b32.xlu0 %v1510, 127
  %v1582 = vpop.permute.xlu0 %1581
  %1583 = vrot.lane.b32.xlu0 %v1511, 127
  %v1584 = vpop.permute.xlu0 %1583
  %1585 = vrot.lane.b32.xlu0 %v1512, 127
  %v1586 = vpop.permute.xlu0 %1585
  %v1587 = vsel %vm221, %v1584, %v1586
  %v1588 = vsel %vm221, %v1582, %v1584
  %v1589 = vsel %vm221, %v1580, %v1582
  %v1590 = vsel %vm221, %v1586, %v1580
  %v1591 = vmul.f32 %v1589, %v95
  %v1592 = vmul.f32 %v1588, %v96
  %v1593 = vmul.f32 %v1587, %v97
  %v1594 = vmul.f32 %v1590, %v98
  %1595 = vrot.lane.b32.xlu0 %v1509, 113
  %v1596 = vpop.permute.xlu0 %1595
  %1597 = vrot.lane.b32.xlu0 %v1510, 113
  %v1598 = vpop.permute.xlu0 %1597
  %1599 = vrot.lane.b32.xlu0 %v1511, 113
  %v1600 = vpop.permute.xlu0 %1599
  %1601 = vrot.lane.b32.xlu0 %v1512, 113
  %v1602 = vpop.permute.xlu0 %1601
  %v1603 = vsel %vm238, %v1600, %v1602
  %v1604 = vsel %vm238, %v1598, %v1600
  %v1605 = vsel %vm238, %v1596, %v1598
  %v1606 = vsel %vm238, %v1602, %v1596
  %v1607 = vmul.f32 %v1605, %v111
  %v1608 = vmul.f32 %v1604, %v112
  %v1609 = vmul.f32 %v1603, %v113
  %v1610 = vmul.f32 %v1606, %v114
  %1611 = vrot.lane.b32.xlu0 %v1509, 112
  %v1612 = vpop.permute.xlu0 %1611
  %1613 = vrot.lane.b32.xlu0 %v1510, 112
  %v1614 = vpop.permute.xlu0 %1613
  %1615 = vrot.lane.b32.xlu0 %v1511, 112
  %v1616 = vpop.permute.xlu0 %1615
  %1617 = vrot.lane.b32.xlu0 %v1512, 112
  %v1618 = vpop.permute.xlu0 %1617
  %v1619 = vsel %vm255, %v1616, %v1618
  %v1620 = vsel %vm255, %v1614, %v1616
  %v1621 = vsel %vm255, %v1612, %v1614
  %v1622 = vsel %vm255, %v1618, %v1612
  %v1623 = vmul.f32 %v1621, %v119
  %v1624 = vmul.f32 %v1620, %v120
  %v1625 = vmul.f32 %v1619, %v121
  %v1626 = vmul.f32 %v1622, %v122
  %1627 = vrot.lane.b32.xlu0 %v1509, 111
  %v1628 = vpop.permute.xlu0 %1627
  %1629 = vrot.lane.b32.xlu0 %v1510, 111
  %v1630 = vpop.permute.xlu0 %1629
  %1631 = vrot.lane.b32.xlu0 %v1511, 111
  %v1632 = vpop.permute.xlu0 %1631
  %1633 = vrot.lane.b32.xlu0 %v1512, 111
  %v1634 = vpop.permute.xlu0 %1633
  %v1635 = vsel %vm272, %v1632, %v1634
  %v1636 = vsel %vm272, %v1630, %v1632
  %v1637 = vsel %vm272, %v1628, %v1630
  %v1638 = vsel %vm272, %v1634, %v1628
  %v1639 = vmul.f32 %v1637, %v131
  %v1640 = vmul.f32 %v1636, %v132
  %v1641 = vmul.f32 %v1635, %v133
  %v1642 = vmul.f32 %v1638, %v134
  %1644 = vset.pattern.permute.xlu0 0
  %1645 = vperm.xlu0 %1644, %v1514
  %v1646 = vpop.permute.xlu0 %1645
  %vm1648 = vcmask 588800
  %v1650 = vsel %vm1648, %v1513, 0
  %v1652 = vand.u32 %v1528, 4294901760
  %1653 = vmatprep.subr.mxu0 %v1652
  %v1654 = vand.u32 %v1527, 4294901760
  %1655 = vmatpush1.msra.mxu0 %v1654
  %v1656 = vand.u32 %v1544, 4294901760
  %1657 = vmatprep.subr.mxu0 %v1656
  %v1658 = vand.u32 %v1543, 4294901760
  %1659 = vmatpush1.msra.mxu0 %v1658
  %v1660 = vand.u32 %v1560, 4294901760
  %1661 = vmatprep.subr.mxu0 %v1660
  %v1662 = vand.u32 %v1559, 4294901760
  %1663 = vmatpush1.msra.mxu0 %v1662
  %v1664 = vand.u32 %v1576, 4294901760
  %1665 = vmatprep.subr.mxu0 %v1664
  %v1666 = vand.u32 %v1575, 4294901760
  %1667 = vmatpush1.msra.mxu0 %v1666
  %v1668 = vand.u32 %v1510, 4294901760
  %1669 = vmatprep.subr.mxu0 %v1668
  %v1670 = vand.u32 %v1509, 4294901760
  %1671 = vmatpush1.msra.mxu0 %v1670
  %v1672 = vand.u32 %v1592, 4294901760
  %1673 = vmatprep.subr.mxu0 %v1672
  %v1674 = vand.u32 %v1591, 4294901760
  %1675 = vmatpush1.msra.mxu0 %v1674
  %v1676 = vand.u32 %v1608, 4294901760
  %1677 = vmatprep.subr.mxu0 %v1676
  %v1678 = vand.u32 %v1607, 4294901760
  %1679 = vmatpush1.msra.mxu0 %v1678
  %v1680 = vand.u32 %v1624, 4294901760
  %1681 = vmatprep.subr.mxu0 %v1680
  %v1682 = vand.u32 %v1623, 4294901760
  %1683 = vmatpush1.msra.mxu0 %v1682
  %v1684 = vand.u32 %v1640, 4294901760
  %1685 = vmatprep.subr.mxu0 %v1684
  %v1686 = vand.u32 %v1639, 4294901760
  %1687 = vmatpush1.msra.mxu0 %v1686
  %1688 = vmatprep.subr.mxu0 0.0
  %1689 = vmatpush1.msra.mxu0 0.0
  %1690 = vmatprep.subr.mxu0 0.0
  %1691 = vmatpush1.msra.mxu0 0.0
  %1692 = vmatprep.subr.mxu0 0.0
  %1693 = vmatpush1.msra.mxu0 0.0
  %1694 = vmatprep.subr.mxu0 0.0
  %1695 = vmatpush1.msra.mxu0 0.0
  %1696 = vmatprep.subr.mxu0 0.0
  %1697 = vmatpush1.msra.mxu0 0.0
  %1698 = vmatprep.subr.mxu0 0.0
  %1699 = vmatpush1.msra.mxu0 0.0
  %1700 = vmatprep.subr.mxu0 0.0
  %1701 = vmatpush1.msra.mxu0 0.0
  %1702 = vmatprep.subr.mxu0 0.0
  %1703 = vmatpush1.msra.mxu0 0.0
  %1704 = vmatprep.subr.mxu0 0.0
  %1705 = vmatpush1.msra.mxu0 0.0
  %1706 = vmatprep.subr.mxu0 0.0
  %1707 = vmatpush1.msra.mxu0 0.0
  %1708 = vmatprep.subr.mxu0 0.0
  %1709 = vmatpush1.msra.mxu0 0.0
  %1710 = vmatprep.subr.mxu0 0.0
  %1711 = vmatpush1.msra.mxu0 0.0
  %1712 = vmatprep.subr.mxu0 0.0
  %1713 = vmatpush1.msra.mxu0 0.0
  %1714 = vmatprep.subr.mxu0 0.0
  %1715 = vmatpush1.msra.mxu0 0.0
  %1716 = vmatprep.subr.mxu0 0.0
  %1717 = vmatpush1.msra.mxu0 0.0
  %1718 = vmatprep.subr.mxu0 0.0
  %1719 = vmatpush1.msra.mxu0 0.0
  %1720 = vmatprep.subr.mxu0 0.0
  %1721 = vmatpush1.msra.mxu0 0.0
  %1722 = vmatprep.subr.mxu0 0.0
  %1723 = vmatpush1.msra.mxu0 0.0
  %1724 = vmatprep.subr.mxu0 0.0
  %1725 = vmatpush1.msra.mxu0 0.0
  %1726 = vmatprep.subr.mxu0 0.0
  %1727 = vmatpush1.msra.mxu0 0.0
  %1728 = vmatprep.subr.mxu0 0.0
  %1729 = vmatpush1.msra.mxu0 0.0
  %1730 = vmatprep.subr.mxu0 0.0
  %1731 = vmatpush1.msra.mxu0 0.0
  %1732 = vmatprep.subr.mxu0 0.0
  %1733 = vmatpush1.msra.mxu0 0.0
  %1734 = vmatprep.mubr.f32.mxu0 0.0
  %v1735 = vand.u32 %v1650, 4294901760
  %v1736 = vsub.f32 %v1650, %v1735
  %v1737 = vand.u32 %v1736, 4294901760
  %v1738 = vsub.f32 %v1736, %v1737
  %v1739 = vand.u32 %v1738, 4294901760
  %1740 = vmatmul.mubr.f32.gmra.mrb[0].mxu0 %v1739
  %v1741 = vpop.f32.mrb[0].mxu0
  %v1742 = vadd.f32 %v1646, %v1741
  %v1743 = vpop.f32.mrb[0].mxu0
  %v1744 = vadd.f32 %v1646, %v1743
  %1745 = vdwg.mxu0
  %v1746 = vand.u32 %v1528, 4294901760
  %v1747 = vsub.f32 %v1528, %v1746
  %v1748 = vand.u32 %v1747, 4294901760
  %v1749 = vsub.f32 %v1747, %v1748
  %v1750 = vand.u32 %v1749, 4294901760
  %1751 = vmatprep.subr.mxu0 %v1750
  %v1752 = vand.u32 %v1527, 4294901760
  %v1753 = vsub.f32 %v1527, %v1752
  %v1754 = vand.u32 %v1753, 4294901760
  %v1755 = vsub.f32 %v1753, %v1754
  %v1756 = vand.u32 %v1755, 4294901760
  %1757 = vmatpush1.msra.mxu0 %v1756
  %v1758 = vand.u32 %v1544, 4294901760
  %v1759 = vsub.f32 %v1544, %v1758
  %v1760 = vand.u32 %v1759, 4294901760
  %v1761 = vsub.f32 %v1759, %v1760
  %v1762 = vand.u32 %v1761, 4294901760
  %1763 = vmatprep.subr.mxu0 %v1762
  %v1764 = vand.u32 %v1543, 4294901760
  %v1765 = vsub.f32 %v1543, %v1764
  %v1766 = vand.u32 %v1765, 4294901760
  %v1767 = vsub.f32 %v1765, %v1766
  %v1768 = vand.u32 %v1767, 4294901760
  %1769 = vmatpush1.msra.mxu0 %v1768
  %v1770 = vand.u32 %v1560, 4294901760
  %v1771 = vsub.f32 %v1560, %v1770
  %v1772 = vand.u32 %v1771, 4294901760
  %v1773 = vsub.f32 %v1771, %v1772
  %v1774 = vand.u32 %v1773, 4294901760
  %1775 = vmatprep.subr.mxu0 %v1774
  %v1776 = vand.u32 %v1559, 4294901760
  %v1777 = vsub.f32 %v1559, %v1776
  %v1778 = vand.u32 %v1777, 4294901760
  %v1779 = vsub.f32 %v1777, %v1778
  %v1780 = vand.u32 %v1779, 4294901760
  %1781 = vmatpush1.msra.mxu0 %v1780
  %v1782 = vand.u32 %v1576, 4294901760
  %v1783 = vsub.f32 %v1576, %v1782
  %v1784 = vand.u32 %v1783, 4294901760
  %v1785 = vsub.f32 %v1783, %v1784
  %v1786 = vand.u32 %v1785, 4294901760
  %1787 = vmatprep.subr.mxu0 %v1786
  %v1788 = vand.u32 %v1575, 4294901760
  %v1789 = vsub.f32 %v1575, %v1788
  %v1790 = vand.u32 %v1789, 4294901760
  %v1791 = vsub.f32 %v1789, %v1790
  %v1792 = vand.u32 %v1791, 4294901760
  %1793 = vmatpush1.msra.mxu0 %v1792
  %v1794 = vand.u32 %v1510, 4294901760
  %v1795 = vsub.f32 %v1510, %v1794
  %v1796 = vand.u32 %v1795, 4294901760
  %v1797 = vsub.f32 %v1795, %v1796
  %v1798 = vand.u32 %v1797, 4294901760
  %1799 = vmatprep.subr.mxu0 %v1798
  %v1800 = vand.u32 %v1509, 4294901760
  %v1801 = vsub.f32 %v1509, %v1800
  %v1802 = vand.u32 %v1801, 4294901760
  %v1803 = vsub.f32 %v1801, %v1802
  %v1804 = vand.u32 %v1803, 4294901760
  %1805 = vmatpush1.msra.mxu0 %v1804
  %v1806 = vand.u32 %v1592, 4294901760
  %v1807 = vsub.f32 %v1592, %v1806
  %v1808 = vand.u32 %v1807, 4294901760
  %v1809 = vsub.f32 %v1807, %v1808
  %v1810 = vand.u32 %v1809, 4294901760
  %1811 = vmatprep.subr.mxu0 %v1810
  %v1812 = vand.u32 %v1591, 4294901760
  %v1813 = vsub.f32 %v1591, %v1812
  %v1814 = vand.u32 %v1813, 4294901760
  %v1815 = vsub.f32 %v1813, %v1814
  %v1816 = vand.u32 %v1815, 4294901760
  %1817 = vmatpush1.msra.mxu0 %v1816
  %v1818 = vand.u32 %v1608, 4294901760
  %v1819 = vsub.f32 %v1608, %v1818
  %v1820 = vand.u32 %v1819, 4294901760
  %v1821 = vsub.f32 %v1819, %v1820
  %v1822 = vand.u32 %v1821, 4294901760
  %1823 = vmatprep.subr.mxu0 %v1822
  %v1824 = vand.u32 %v1607, 4294901760
  %v1825 = vsub.f32 %v1607, %v1824
  %v1826 = vand.u32 %v1825, 4294901760
  %v1827 = vsub.f32 %v1825, %v1826
  %v1828 = vand.u32 %v1827, 4294901760
  %1829 = vmatpush1.msra.mxu0 %v1828
  %v1830 = vand.u32 %v1624, 4294901760
  %v1831 = vsub.f32 %v1624, %v1830
  %v1832 = vand.u32 %v1831, 4294901760
  %v1833 = vsub.f32 %v1831, %v1832
  %v1834 = vand.u32 %v1833, 4294901760
  %1835 = vmatprep.subr.mxu0 %v1834
  %v1836 = vand.u32 %v1623, 4294901760
  %v1837 = vsub.f32 %v1623, %v1836
  %v1838 = vand.u32 %v1837, 4294901760
  %v1839 = vsub.f32 %v1837, %v1838
  %v1840 = vand.u32 %v1839, 4294901760
  %1841 = vmatpush1.msra.mxu0 %v1840
  %v1842 = vand.u32 %v1640, 4294901760
  %v1843 = vsub.f32 %v1640, %v1842
  %v1844 = vand.u32 %v1843, 4294901760
  %v1845 = vsub.f32 %v1843, %v1844
  %v1846 = vand.u32 %v1845, 4294901760
  %1847 = vmatprep.subr.mxu0 %v1846
  %v1848 = vand.u32 %v1639, 4294901760
  %v1849 = vsub.f32 %v1639, %v1848
  %v1850 = vand.u32 %v1849, 4294901760
  %v1851 = vsub.f32 %v1849, %v1850
  %v1852 = vand.u32 %v1851, 4294901760
  %1853 = vmatpush1.msra.mxu0 %v1852
  %1854 = vmatprep.subr.mxu0 0.0
  %1855 = vmatpush1.msra.mxu0 0.0
  %1856 = vmatprep.subr.mxu0 0.0
  %1857 = vmatpush1.msra.mxu0 0.0
  %1858 = vmatprep.subr.mxu0 0.0
  %1859 = vmatpush1.msra.mxu0 0.0
  %1860 = vmatprep.subr.mxu0 0.0
  %1861 = vmatpush1.msra.mxu0 0.0
  %1862 = vmatprep.subr.mxu0 0.0
  %1863 = vmatpush1.msra.mxu0 0.0
  %1864 = vmatprep.subr.mxu0 0.0
  %1865 = vmatpush1.msra.mxu0 0.0
  %1866 = vmatprep.subr.mxu0 0.0
  %1867 = vmatpush1.msra.mxu0 0.0
  %1868 = vmatprep.subr.mxu0 0.0
  %1869 = vmatpush1.msra.mxu0 0.0
  %1870 = vmatprep.subr.mxu0 0.0
  %1871 = vmatpush1.msra.mxu0 0.0
  %1872 = vmatprep.subr.mxu0 0.0
  %1873 = vmatpush1.msra.mxu0 0.0
  %1874 = vmatprep.subr.mxu0 0.0
  %1875 = vmatpush1.msra.mxu0 0.0
  %1876 = vmatprep.subr.mxu0 0.0
  %1877 = vmatpush1.msra.mxu0 0.0
  %1878 = vmatprep.subr.mxu0 0.0
  %1879 = vmatpush1.msra.mxu0 0.0
  %1880 = vmatprep.subr.mxu0 0.0
  %1881 = vmatpush1.msra.mxu0 0.0
  %1882 = vmatprep.subr.mxu0 0.0
  %1883 = vmatpush1.msra.mxu0 0.0
  %1884 = vmatprep.subr.mxu0 0.0
  %1885 = vmatpush1.msra.mxu0 0.0
  %1886 = vmatprep.subr.mxu0 0.0
  %1887 = vmatpush1.msra.mxu0 0.0
  %1888 = vmatprep.subr.mxu0 0.0
  %1889 = vmatpush1.msra.mxu0 0.0
  %1890 = vmatprep.subr.mxu0 0.0
  %1891 = vmatpush1.msra.mxu0 0.0
  %1892 = vmatprep.subr.mxu0 0.0
  %1893 = vmatpush1.msra.mxu0 0.0
  %1894 = vmatprep.subr.mxu0 0.0
  %1895 = vmatpush1.msra.mxu0 0.0
  %1896 = vmatprep.subr.mxu0 0.0
  %1897 = vmatpush1.msra.mxu0 0.0
  %1898 = vmatprep.subr.mxu0 0.0
  %1899 = vmatpush1.msra.mxu0 0.0
  %1900 = vmatprep.mubr.f32.mxu0 0.0
  %v1901 = vand.u32 %v1650, 4294901760
  %1902 = vmatmul.mubr.f32.gmra.mrb[0].mxu0 %v1901
  %v1903 = vpop.f32.mrb[0].mxu0
  %v1904 = vadd.f32 %v1742, %v1903
  %v1905 = vpop.f32.mrb[0].mxu0
  %v1906 = vadd.f32 %v1744, %v1905
  %1907 = vdwg.mxu0
  %v1908 = vand.u32 %v1528, 4294901760
  %v1909 = vsub.f32 %v1528, %v1908
  %1910 = vmatprep.subr.mxu0 %v1909
  %v1911 = vand.u32 %v1527, 4294901760
  %v1912 = vsub.f32 %v1527, %v1911
  %1913 = vmatpush1.msra.mxu0 %v1912
  %v1914 = vand.u32 %v1544, 4294901760
  %v1915 = vsub.f32 %v1544, %v1914
  %1916 = vmatprep.subr.mxu0 %v1915
  %v1917 = vand.u32 %v1543, 4294901760
  %v1918 = vsub.f32 %v1543, %v1917
  %1919 = vmatpush1.msra.mxu0 %v1918
  %v1920 = vand.u32 %v1560, 4294901760
  %v1921 = vsub.f32 %v1560, %v1920
  %1922 = vmatprep.subr.mxu0 %v1921
  %v1923 = vand.u32 %v1559, 4294901760
  %v1924 = vsub.f32 %v1559, %v1923
  %1925 = vmatpush1.msra.mxu0 %v1924
  %v1926 = vand.u32 %v1576, 4294901760
  %v1927 = vsub.f32 %v1576, %v1926
  %1928 = vmatprep.subr.mxu0 %v1927
  %v1929 = vand.u32 %v1575, 4294901760
  %v1930 = vsub.f32 %v1575, %v1929
  %1931 = vmatpush1.msra.mxu0 %v1930
  %v1932 = vand.u32 %v1510, 4294901760
  %v1933 = vsub.f32 %v1510, %v1932
  %1934 = vmatprep.subr.mxu0 %v1933
  %v1935 = vand.u32 %v1509, 4294901760
  %v1936 = vsub.f32 %v1509, %v1935
  %1937 = vmatpush1.msra.mxu0 %v1936
  %v1938 = vand.u32 %v1592, 4294901760
  %v1939 = vsub.f32 %v1592, %v1938
  %1940 = vmatprep.subr.mxu0 %v1939
  %v1941 = vand.u32 %v1591, 4294901760
  %v1942 = vsub.f32 %v1591, %v1941
  %1943 = vmatpush1.msra.mxu0 %v1942
  %v1944 = vand.u32 %v1608, 4294901760
  %v1945 = vsub.f32 %v1608, %v1944
  %1946 = vmatprep.subr.mxu0 %v1945
  %v1947 = vand.u32 %v1607, 4294901760
  %v1948 = vsub.f32 %v1607, %v1947
  %1949 = vmatpush1.msra.mxu0 %v1948
  %v1950 = vand.u32 %v1624, 4294901760
  %v1951 = vsub.f32 %v1624, %v1950
  %1952 = vmatprep.subr.mxu0 %v1951
  %v1953 = vand.u32 %v1623, 4294901760
  %v1954 = vsub.f32 %v1623, %v1953
  %1955 = vmatpush1.msra.mxu0 %v1954
  %v1956 = vand.u32 %v1640, 4294901760
  %v1957 = vsub.f32 %v1640, %v1956
  %1958 = vmatprep.subr.mxu0 %v1957
  %v1959 = vand.u32 %v1639, 4294901760
  %v1960 = vsub.f32 %v1639, %v1959
  %1961 = vmatpush1.msra.mxu0 %v1960
  %1962 = vmatprep.subr.mxu0 0.0
  %1963 = vmatpush1.msra.mxu0 0.0
  %1964 = vmatprep.subr.mxu0 0.0
  %1965 = vmatpush1.msra.mxu0 0.0
  %1966 = vmatprep.subr.mxu0 0.0
  %1967 = vmatpush1.msra.mxu0 0.0
  %1968 = vmatprep.subr.mxu0 0.0
  %1969 = vmatpush1.msra.mxu0 0.0
  %1970 = vmatprep.subr.mxu0 0.0
  %1971 = vmatpush1.msra.mxu0 0.0
  %1972 = vmatprep.subr.mxu0 0.0
  %1973 = vmatpush1.msra.mxu0 0.0
  %1974 = vmatprep.subr.mxu0 0.0
  %1975 = vmatpush1.msra.mxu0 0.0
  %1976 = vmatprep.subr.mxu0 0.0
  %1977 = vmatpush1.msra.mxu0 0.0
  %1978 = vmatprep.subr.mxu0 0.0
  %1979 = vmatpush1.msra.mxu0 0.0
  %1980 = vmatprep.subr.mxu0 0.0
  %1981 = vmatpush1.msra.mxu0 0.0
  %1982 = vmatprep.subr.mxu0 0.0
  %1983 = vmatpush1.msra.mxu0 0.0
  %1984 = vmatprep.subr.mxu0 0.0
  %1985 = vmatpush1.msra.mxu0 0.0
  %1986 = vmatprep.subr.mxu0 0.0
  %1987 = vmatpush1.msra.mxu0 0.0
  %1988 = vmatprep.subr.mxu0 0.0
  %1989 = vmatpush1.msra.mxu0 0.0
  %1990 = vmatprep.subr.mxu0 0.0
  %1991 = vmatpush1.msra.mxu0 0.0
  %1992 = vmatprep.subr.mxu0 0.0
  %1993 = vmatpush1.msra.mxu0 0.0
  %1994 = vmatprep.subr.mxu0 0.0
  %1995 = vmatpush1.msra.mxu0 0.0
  %1996 = vmatprep.subr.mxu0 0.0
  %1997 = vmatpush1.msra.mxu0 0.0
  %1998 = vmatprep.subr.mxu0 0.0
  %1999 = vmatpush1.msra.mxu0 0.0
  %2000 = vmatprep.subr.mxu0 0.0
  %2001 = vmatpush1.msra.mxu0 0.0
  %2002 = vmatprep.subr.mxu0 0.0
  %2003 = vmatpush1.msra.mxu0 0.0
  %2004 = vmatprep.subr.mxu0 0.0
  %2005 = vmatpush1.msra.mxu0 0.0
  %2006 = vmatprep.subr.mxu0 0.0
  %2007 = vmatpush1.msra.mxu0 0.0
  %2008 = vmatprep.mubr.f32.mxu0 0.0
  %v2009 = vand.u32 %v1650, 4294901760
  %v2010 = vsub.f32 %v1650, %v2009
  %2011 = vmatmul.mubr.f32.gmra.mrb[0].mxu0 %v2010
  %v2012 = vpop.f32.mrb[0].mxu0
  %v2013 = vadd.f32 %v1904, %v2012
  %v2014 = vpop.f32.mrb[0].mxu0
  %v2015 = vadd.f32 %v1906, %v2014
  %2016 = vdwg.mxu0
  %v2017 = vand.u32 %v1528, 4294901760
  %2018 = vmatprep.subr.mxu0 %v2017
  %v2019 = vand.u32 %v1527, 4294901760
  %2020 = vmatpush1.msra.mxu0 %v2019
  %v2021 = vand.u32 %v1544, 4294901760
  %2022 = vmatprep.subr.mxu0 %v2021
  %v2023 = vand.u32 %v1543, 4294901760
  %2024 = vmatpush1.msra.mxu0 %v2023
  %v2025 = vand.u32 %v1560, 4294901760
  %2026 = vmatprep.subr.mxu0 %v2025
  %v2027 = vand.u32 %v1559, 4294901760
  %2028 = vmatpush1.msra.mxu0 %v2027
  %v2029 = vand.u32 %v1576, 4294901760
  %2030 = vmatprep.subr.mxu0 %v2029
  %v2031 = vand.u32 %v1575, 4294901760
  %2032 = vmatpush1.msra.mxu0 %v2031
  %v2033 = vand.u32 %v1510, 4294901760
  %2034 = vmatprep.subr.mxu0 %v2033
  %v2035 = vand.u32 %v1509, 4294901760
  %2036 = vmatpush1.msra.mxu0 %v2035
  %v2037 = vand.u32 %v1592, 4294901760
  %2038 = vmatprep.subr.mxu0 %v2037
  %v2039 = vand.u32 %v1591, 4294901760
  %2040 = vmatpush1.msra.mxu0 %v2039
  %v2041 = vand.u32 %v1608, 4294901760
  %2042 = vmatprep.subr.mxu0 %v2041
  %v2043 = vand.u32 %v1607, 4294901760
  %2044 = vmatpush1.msra.mxu0 %v2043
  %v2045 = vand.u32 %v1624, 4294901760
  %2046 = vmatprep.subr.mxu0 %v2045
  %v2047 = vand.u32 %v1623, 4294901760
  %2048 = vmatpush1.msra.mxu0 %v2047
  %v2049 = vand.u32 %v1640, 4294901760
  %2050 = vmatprep.subr.mxu0 %v2049
  %v2051 = vand.u32 %v1639, 4294901760
  %2052 = vmatpush1.msra.mxu0 %v2051
  %2053 = vmatprep.subr.mxu0 0.0
  %2054 = vmatpush1.msra.mxu0 0.0
  %2055 = vmatprep.subr.mxu0 0.0
  %2056 = vmatpush1.msra.mxu0 0.0
  %2057 = vmatprep.subr.mxu0 0.0
  %2058 = vmatpush1.msra.mxu0 0.0
  %2059 = vmatprep.subr.mxu0 0.0
  %2060 = vmatpush1.msra.mxu0 0.0
  %2061 = vmatprep.subr.mxu0 0.0
  %2062 = vmatpush1.msra.mxu0 0.0
  %2063 = vmatprep.subr.mxu0 0.0
  %2064 = vmatpush1.msra.mxu0 0.0
  %2065 = vmatprep.subr.mxu0 0.0
  %2066 = vmatpush1.msra.mxu0 0.0
  %2067 = vmatprep.subr.mxu0 0.0
  %2068 = vmatpush1.msra.mxu0 0.0
  %2069 = vmatprep.subr.mxu0 0.0
  %2070 = vmatpush1.msra.mxu0 0.0
  %2071 = vmatprep.subr.mxu0 0.0
  %2072 = vmatpush1.msra.mxu0 0.0
  %2073 = vmatprep.subr.mxu0 0.0
  %2074 = vmatpush1.msra.mxu0 0.0
  %2075 = vmatprep.subr.mxu0 0.0
  %2076 = vmatpush1.msra.mxu0 0.0
  %2077 = vmatprep.subr.mxu0 0.0
  %2078 = vmatpush1.msra.mxu0 0.0
  %2079 = vmatprep.subr.mxu0 0.0
  %2080 = vmatpush1.msra.mxu0 0.0
  %2081 = vmatprep.subr.mxu0 0.0
  %2082 = vmatpush1.msra.mxu0 0.0
  %2083 = vmatprep.subr.mxu0 0.0
  %2084 = vmatpush1.msra.mxu0 0.0
  %2085 = vmatprep.subr.mxu0 0.0
  %2086 = vmatpush1.msra.mxu0 0.0
  %2087 = vmatprep.subr.mxu0 0.0
  %2088 = vmatpush1.msra.mxu0 0.0
  %2089 = vmatprep.subr.mxu0 0.0
  %2090 = vmatpush1.msra.mxu0 0.0
  %2091 = vmatprep.subr.mxu0 0.0
  %2092 = vmatpush1.msra.mxu0 0.0
  %2093 = vmatprep.subr.mxu0 0.0
  %2094 = vmatpush1.msra.mxu0 0.0
  %2095 = vmatprep.subr.mxu0 0.0
  %2096 = vmatpush1.msra.mxu0 0.0
  %2097 = vmatprep.subr.mxu0 0.0
  %2098 = vmatpush1.msra.mxu0 0.0
  %2099 = vmatprep.mubr.f32.mxu0 0.0
  %v2100 = vand.u32 %v1650, 4294901760
  %v2101 = vsub.f32 %v1650, %v2100
  %v2102 = vand.u32 %v2101, 4294901760
  %2103 = vmatmul.mubr.f32.gmra.mrb[0].mxu0 %v2102
  %v2104 = vpop.f32.mrb[0].mxu0
  %v2105 = vadd.f32 %v2013, %v2104
  %v2106 = vpop.f32.mrb[0].mxu0
  %v2107 = vadd.f32 %v2015, %v2106
  %2108 = vdwg.mxu0
  %v2109 = vand.u32 %v1528, 4294901760
  %v2110 = vsub.f32 %v1528, %v2109
  %v2111 = vand.u32 %v2110, 4294901760
  %2112 = vmatprep.subr.mxu0 %v2111
  %v2113 = vand.u32 %v1527, 4294901760
  %v2114 = vsub.f32 %v1527, %v2113
  %v2115 = vand.u32 %v2114, 4294901760
  %2116 = vmatpush1.msra.mxu0 %v2115
  %v2117 = vand.u32 %v1544, 4294901760
  %v2118 = vsub.f32 %v1544, %v2117
  %v2119 = vand.u32 %v2118, 4294901760
  %2120 = vmatprep.subr.mxu0 %v2119
  %v2121 = vand.u32 %v1543, 4294901760
  %v2122 = vsub.f32 %v1543, %v2121
  %v2123 = vand.u32 %v2122, 4294901760
  %2124 = vmatpush1.msra.mxu0 %v2123
  %v2125 = vand.u32 %v1560, 4294901760
  %v2126 = vsub.f32 %v1560, %v2125
  %v2127 = vand.u32 %v2126, 4294901760
  %2128 = vmatprep.subr.mxu0 %v2127
  %v2129 = vand.u32 %v1559, 4294901760
  %v2130 = vsub.f32 %v1559, %v2129
  %v2131 = vand.u32 %v2130, 4294901760
  %2132 = vmatpush1.msra.mxu0 %v2131
  %v2133 = vand.u32 %v1576, 4294901760
  %v2134 = vsub.f32 %v1576, %v2133
  %v2135 = vand.u32 %v2134, 4294901760
  %2136 = vmatprep.subr.mxu0 %v2135
  %v2137 = vand.u32 %v1575, 4294901760
  %v2138 = vsub.f32 %v1575, %v2137
  %v2139 = vand.u32 %v2138, 4294901760
  %2140 = vmatpush1.msra.mxu0 %v2139
  %v2141 = vand.u32 %v1510, 4294901760
  %v2142 = vsub.f32 %v1510, %v2141
  %v2143 = vand.u32 %v2142, 4294901760
  %2144 = vmatprep.subr.mxu0 %v2143
  %v2145 = vand.u32 %v1509, 4294901760
  %v2146 = vsub.f32 %v1509, %v2145
  %v2147 = vand.u32 %v2146, 4294901760
  %2148 = vmatpush1.msra.mxu0 %v2147
  %v2149 = vand.u32 %v1592, 4294901760
  %v2150 = vsub.f32 %v1592, %v2149
  %v2151 = vand.u32 %v2150, 4294901760
  %2152 = vmatprep.subr.mxu0 %v2151
  %v2153 = vand.u32 %v1591, 4294901760
  %v2154 = vsub.f32 %v1591, %v2153
  %v2155 = vand.u32 %v2154, 4294901760
  %2156 = vmatpush1.msra.mxu0 %v2155
  %v2157 = vand.u32 %v1608, 4294901760
  %v2158 = vsub.f32 %v1608, %v2157
  %v2159 = vand.u32 %v2158, 4294901760
  %2160 = vmatprep.subr.mxu0 %v2159
  %v2161 = vand.u32 %v1607, 4294901760
  %v2162 = vsub.f32 %v1607, %v2161
  %v2163 = vand.u32 %v2162, 4294901760
  %2164 = vmatpush1.msra.mxu0 %v2163
  %v2165 = vand.u32 %v1624, 4294901760
  %v2166 = vsub.f32 %v1624, %v2165
  %v2167 = vand.u32 %v2166, 4294901760
  %2168 = vmatprep.subr.mxu0 %v2167
  %v2169 = vand.u32 %v1623, 4294901760
  %v2170 = vsub.f32 %v1623, %v2169
  %v2171 = vand.u32 %v2170, 4294901760
  %2172 = vmatpush1.msra.mxu0 %v2171
  %v2173 = vand.u32 %v1640, 4294901760
  %v2174 = vsub.f32 %v1640, %v2173
  %v2175 = vand.u32 %v2174, 4294901760
  %2176 = vmatprep.subr.mxu0 %v2175
  %v2177 = vand.u32 %v1639, 4294901760
  %v2178 = vsub.f32 %v1639, %v2177
  %v2179 = vand.u32 %v2178, 4294901760
  %2180 = vmatpush1.msra.mxu0 %v2179
  %2181 = vmatprep.subr.mxu0 0.0
  %2182 = vmatpush1.msra.mxu0 0.0
  %2183 = vmatprep.subr.mxu0 0.0
  %2184 = vmatpush1.msra.mxu0 0.0
  %2185 = vmatprep.subr.mxu0 0.0
  %2186 = vmatpush1.msra.mxu0 0.0
  %2187 = vmatprep.subr.mxu0 0.0
  %2188 = vmatpush1.msra.mxu0 0.0
  %2189 = vmatprep.subr.mxu0 0.0
  %2190 = vmatpush1.msra.mxu0 0.0
  %2191 = vmatprep.subr.mxu0 0.0
  %2192 = vmatpush1.msra.mxu0 0.0
  %2193 = vmatprep.subr.mxu0 0.0
  %2194 = vmatpush1.msra.mxu0 0.0
  %2195 = vmatprep.subr.mxu0 0.0
  %2196 = vmatpush1.msra.mxu0 0.0
  %2197 = vmatprep.subr.mxu0 0.0
  %2198 = vmatpush1.msra.mxu0 0.0
  %2199 = vmatprep.subr.mxu0 0.0
  %2200 = vmatpush1.msra.mxu0 0.0
  %2201 = vmatprep.subr.mxu0 0.0
  %2202 = vmatpush1.msra.mxu0 0.0
  %2203 = vmatprep.subr.mxu0 0.0
  %2204 = vmatpush1.msra.mxu0 0.0
  %2205 = vmatprep.subr.mxu0 0.0
  %2206 = vmatpush1.msra.mxu0 0.0
  %2207 = vmatprep.subr.mxu0 0.0
  %2208 = vmatpush1.msra.mxu0 0.0
  %2209 = vmatprep.subr.mxu0 0.0
  %2210 = vmatpush1.msra.mxu0 0.0
  %2211 = vmatprep.subr.mxu0 0.0
  %2212 = vmatpush1.msra.mxu0 0.0
  %2213 = vmatprep.subr.mxu0 0.0
  %2214 = vmatpush1.msra.mxu0 0.0
  %2215 = vmatprep.subr.mxu0 0.0
  %2216 = vmatpush1.msra.mxu0 0.0
  %2217 = vmatprep.subr.mxu0 0.0
  %2218 = vmatpush1.msra.mxu0 0.0
  %2219 = vmatprep.subr.mxu0 0.0
  %2220 = vmatpush1.msra.mxu0 0.0
  %2221 = vmatprep.subr.mxu0 0.0
  %2222 = vmatpush1.msra.mxu0 0.0
  %2223 = vmatprep.subr.mxu0 0.0
  %2224 = vmatpush1.msra.mxu0 0.0
  %2225 = vmatprep.subr.mxu0 0.0
  %2226 = vmatpush1.msra.mxu0 0.0
  %2227 = vmatprep.mubr.f32.mxu0 0.0
  %v2228 = vand.u32 %v1650, 4294901760
  %2229 = vmatmul.mubr.f32.gmra.mrb[0].mxu0 %v2228
  %v2230 = vpop.f32.mrb[0].mxu0
  %v2231 = vadd.f32 %v2105, %v2230
  %v2232 = vpop.f32.mrb[0].mxu0
  %v2233 = vadd.f32 %v2107, %v2232
  %2234 = vdwg.mxu0
  %v2235 = vand.u32 %v1528, 4294901760
  %2236 = vmatprep.subr.mxu0 %v2235
  %v2237 = vand.u32 %v1527, 4294901760
  %2238 = vmatpush1.msra.mxu0 %v2237
  %v2239 = vand.u32 %v1544, 4294901760
  %2240 = vmatprep.subr.mxu0 %v2239
  %v2241 = vand.u32 %v1543, 4294901760
  %2242 = vmatpush1.msra.mxu0 %v2241
  %v2243 = vand.u32 %v1560, 4294901760
  %2244 = vmatprep.subr.mxu0 %v2243
  %v2245 = vand.u32 %v1559, 4294901760
  %2246 = vmatpush1.msra.mxu0 %v2245
  %v2247 = vand.u32 %v1576, 4294901760
  %2248 = vmatprep.subr.mxu0 %v2247
  %v2249 = vand.u32 %v1575, 4294901760
  %2250 = vmatpush1.msra.mxu0 %v2249
  %v2251 = vand.u32 %v1510, 4294901760
  %2252 = vmatprep.subr.mxu0 %v2251
  %v2253 = vand.u32 %v1509, 4294901760
  %2254 = vmatpush1.msra.mxu0 %v2253
  %v2255 = vand.u32 %v1592, 4294901760
  %2256 = vmatprep.subr.mxu0 %v2255
  %v2257 = vand.u32 %v1591, 4294901760
  %2258 = vmatpush1.msra.mxu0 %v2257
  %v2259 = vand.u32 %v1608, 4294901760
  %2260 = vmatprep.subr.mxu0 %v2259
  %v2261 = vand.u32 %v1607, 4294901760
  %2262 = vmatpush1.msra.mxu0 %v2261
  %v2263 = vand.u32 %v1624, 4294901760
  %2264 = vmatprep.subr.mxu0 %v2263
  %v2265 = vand.u32 %v1623, 4294901760
  %2266 = vmatpush1.msra.mxu0 %v2265
  %v2267 = vand.u32 %v1640, 4294901760
  %2268 = vmatprep.subr.mxu0 %v2267
  %v2269 = vand.u32 %v1639, 4294901760
  %2270 = vmatpush1.msra.mxu0 %v2269
  %2271 = vmatprep.subr.mxu0 0.0
  %2272 = vmatpush1.msra.mxu0 0.0
  %2273 = vmatprep.subr.mxu0 0.0
  %2274 = vmatpush1.msra.mxu0 0.0
  %2275 = vmatprep.subr.mxu0 0.0
  %2276 = vmatpush1.msra.mxu0 0.0
  %2277 = vmatprep.subr.mxu0 0.0
  %2278 = vmatpush1.msra.mxu0 0.0
  %2279 = vmatprep.subr.mxu0 0.0
  %2280 = vmatpush1.msra.mxu0 0.0
  %2281 = vmatprep.subr.mxu0 0.0
  %2282 = vmatpush1.msra.mxu0 0.0
  %2283 = vmatprep.subr.mxu0 0.0
  %2284 = vmatpush1.msra.mxu0 0.0
  %2285 = vmatprep.subr.mxu0 0.0
  %2286 = vmatpush1.msra.mxu0 0.0
  %2287 = vmatprep.subr.mxu0 0.0
  %2288 = vmatpush1.msra.mxu0 0.0
  %2289 = vmatprep.subr.mxu0 0.0
  %2290 = vmatpush1.msra.mxu0 0.0
  %2291 = vmatprep.subr.mxu0 0.0
  %2292 = vmatpush1.msra.mxu0 0.0
  %2293 = vmatprep.subr.mxu0 0.0
  %2294 = vmatpush1.msra.mxu0 0.0
  %2295 = vmatprep.subr.mxu0 0.0
  %2296 = vmatpush1.msra.mxu0 0.0
  %2297 = vmatprep.subr.mxu0 0.0
  %2298 = vmatpush1.msra.mxu0 0.0
  %2299 = vmatprep.subr.mxu0 0.0
  %2300 = vmatpush1.msra.mxu0 0.0
  %2301 = vmatprep.subr.mxu0 0.0
  %2302 = vmatpush1.msra.mxu0 0.0
  %2303 = vmatprep.subr.mxu0 0.0
  %2304 = vmatpush1.msra.mxu0 0.0
  %2305 = vmatprep.subr.mxu0 0.0
  %2306 = vmatpush1.msra.mxu0 0.0
  %2307 = vmatprep.subr.mxu0 0.0
  %2308 = vmatpush1.msra.mxu0 0.0
  %2309 = vmatprep.subr.mxu0 0.0
  %2310 = vmatpush1.msra.mxu0 0.0
  %2311 = vmatprep.subr.mxu0 0.0
  %2312 = vmatpush1.msra.mxu0 0.0
  %2313 = vmatprep.subr.mxu0 0.0
  %2314 = vmatpush1.msra.mxu0 0.0
  %2315 = vmatprep.subr.mxu0 0.0
  %2316 = vmatpush1.msra.mxu0 0.0
  %2317 = vmatprep.mubr.f32.mxu0 0.0
  %v2318 = vand.u32 %v1650, 4294901760
  %2319 = vmatmul.mubr.f32.gmra.mrb[0].mxu0 %v2318
  %v2320 = vpop.f32.mrb[0].mxu0
  %v2321 = vadd.f32 %v2231, %v2320
  %v2322 = vpop.f32.mrb[0].mxu0
  %v2323 = vadd.f32 %v2233, %v2322
  %2324 = vdwg.mxu0
  %v2325 = vand.u32 %v1530, 4294901760
  %2326 = vmatprep.subr.mxu0 %v2325
  %v2327 = vand.u32 %v1529, 4294901760
  %2328 = vmatpush1.msra.mxu0 %v2327
  %v2329 = vand.u32 %v1546, 4294901760
  %2330 = vmatprep.subr.mxu0 %v2329
  %v2331 = vand.u32 %v1545, 4294901760
  %2332 = vmatpush1.msra.mxu0 %v2331
  %v2333 = vand.u32 %v1562, 4294901760
  %2334 = vmatprep.subr.mxu0 %v2333
  %v2335 = vand.u32 %v1561, 4294901760
  %2336 = vmatpush1.msra.mxu0 %v2335
  %v2337 = vand.u32 %v1578, 4294901760
  %2338 = vmatprep.subr.mxu0 %v2337
  %v2339 = vand.u32 %v1577, 4294901760
  %2340 = vmatpush1.msra.mxu0 %v2339
  %v2341 = vand.u32 %v1512, 4294901760
  %2342 = vmatprep.subr.mxu0 %v2341
  %v2343 = vand.u32 %v1511, 4294901760
  %2344 = vmatpush1.msra.mxu0 %v2343
  %v2345 = vand.u32 %v1594, 4294901760
  %2346 = vmatprep.subr.mxu0 %v2345
  %v2347 = vand.u32 %v1593, 4294901760
  %2348 = vmatpush1.msra.mxu0 %v2347
  %v2349 = vand.u32 %v1610, 4294901760
  %2350 = vmatprep.subr.mxu0 %v2349
  %v2351 = vand.u32 %v1609, 4294901760
  %2352 = vmatpush1.msra.mxu0 %v2351
  %v2353 = vand.u32 %v1626, 4294901760
  %2354 = vmatprep.subr.mxu0 %v2353
  %v2355 = vand.u32 %v1625, 4294901760
  %2356 = vmatpush1.msra.mxu0 %v2355
  %v2357 = vand.u32 %v1642, 4294901760
  %2358 = vmatprep.subr.mxu0 %v2357
  %v2359 = vand.u32 %v1641, 4294901760
  %2360 = vmatpush1.msra.mxu0 %v2359
  %2361 = vmatprep.subr.mxu0 0.0
  %2362 = vmatpush1.msra.mxu0 0.0
  %2363 = vmatprep.subr.mxu0 0.0
  %2364 = vmatpush1.msra.mxu0 0.0
  %2365 = vmatprep.subr.mxu0 0.0
  %2366 = vmatpush1.msra.mxu0 0.0
  %2367 = vmatprep.subr.mxu0 0.0
  %2368 = vmatpush1.msra.mxu0 0.0
  %2369 = vmatprep.subr.mxu0 0.0
  %2370 = vmatpush1.msra.mxu0 0.0
  %2371 = vmatprep.subr.mxu0 0.0
  %2372 = vmatpush1.msra.mxu0 0.0
  %2373 = vmatprep.subr.mxu0 0.0
  %2374 = vmatpush1.msra.mxu0 0.0
  %2375 = vmatprep.subr.mxu0 0.0
  %2376 = vmatpush1.msra.mxu0 0.0
  %2377 = vmatprep.subr.mxu0 0.0
  %2378 = vmatpush1.msra.mxu0 0.0
  %2379 = vmatprep.subr.mxu0 0.0
  %2380 = vmatpush1.msra.mxu0 0.0
  %2381 = vmatprep.subr.mxu0 0.0
  %2382 = vmatpush1.msra.mxu0 0.0
  %2383 = vmatprep.subr.mxu0 0.0
  %2384 = vmatpush1.msra.mxu0 0.0
  %2385 = vmatprep.subr.mxu0 0.0
  %2386 = vmatpush1.msra.mxu0 0.0
  %2387 = vmatprep.subr.mxu0 0.0
  %2388 = vmatpush1.msra.mxu0 0.0
  %2389 = vmatprep.subr.mxu0 0.0
  %2390 = vmatpush1.msra.mxu0 0.0
  %2391 = vmatprep.subr.mxu0 0.0
  %2392 = vmatpush1.msra.mxu0 0.0
  %2393 = vmatprep.subr.mxu0 0.0
  %2394 = vmatpush1.msra.mxu0 0.0
  %2395 = vmatprep.subr.mxu0 0.0
  %2396 = vmatpush1.msra.mxu0 0.0
  %2397 = vmatprep.subr.mxu0 0.0
  %2398 = vmatpush1.msra.mxu0 0.0
  %2399 = vmatprep.subr.mxu0 0.0
  %2400 = vmatpush1.msra.mxu0 0.0
  %2401 = vmatprep.subr.mxu0 0.0
  %2402 = vmatpush1.msra.mxu0 0.0
  %2403 = vmatprep.subr.mxu0 0.0
  %2404 = vmatpush1.msra.mxu0 0.0
  %2405 = vmatprep.subr.mxu0 0.0
  %2406 = vmatpush1.msra.mxu0 0.0
  %2407 = vmatprep.mubr.f32.mxu0 0.0
  %v2408 = vand.u32 %v1650, 4294901760
  %v2409 = vsub.f32 %v1650, %v2408
  %v2410 = vand.u32 %v2409, 4294901760
  %v2411 = vsub.f32 %v2409, %v2410
  %v2412 = vand.u32 %v2411, 4294901760
  %2413 = vmatmul.mubr.f32.gmra.mrb[0].mxu0 %v2412
  %v2414 = vpop.f32.mrb[0].mxu0
  %v2415 = vadd.f32 %v1646, %v2414
  %v2416 = vpop.f32.mrb[0].mxu0
  %v2417 = vadd.f32 %v1646, %v2416
  %2418 = vdwg.mxu0
  %v2419 = vand.u32 %v1530, 4294901760
  %v2420 = vsub.f32 %v1530, %v2419
  %v2421 = vand.u32 %v2420, 4294901760
  %v2422 = vsub.f32 %v2420, %v2421
  %v2423 = vand.u32 %v2422, 4294901760
  %2424 = vmatprep.subr.mxu0 %v2423
  %v2425 = vand.u32 %v1529, 4294901760
  %v2426 = vsub.f32 %v1529, %v2425
  %v2427 = vand.u32 %v2426, 4294901760
  %v2428 = vsub.f32 %v2426, %v2427
  %v2429 = vand.u32 %v2428, 4294901760
  %2430 = vmatpush1.msra.mxu0 %v2429
  %v2431 = vand.u32 %v1546, 4294901760
  %v2432 = vsub.f32 %v1546, %v2431
  %v2433 = vand.u32 %v2432, 4294901760
  %v2434 = vsub.f32 %v2432, %v2433
  %v2435 = vand.u32 %v2434, 4294901760
  %2436 = vmatprep.subr.mxu0 %v2435
  %v2437 = vand.u32 %v1545, 4294901760
  %v2438 = vsub.f32 %v1545, %v2437
  %v2439 = vand.u32 %v2438, 4294901760
  %v2440 = vsub.f32 %v2438, %v2439
  %v2441 = vand.u32 %v2440, 4294901760
  %2442 = vmatpush1.msra.mxu0 %v2441
  %v2443 = vand.u32 %v1562, 4294901760
  %v2444 = vsub.f32 %v1562, %v2443
  %v2445 = vand.u32 %v2444, 4294901760
  %v2446 = vsub.f32 %v2444, %v2445
  %v2447 = vand.u32 %v2446, 4294901760
  %2448 = vmatprep.subr.mxu0 %v2447
  %v2449 = vand.u32 %v1561, 4294901760
  %v2450 = vsub.f32 %v1561, %v2449
  %v2451 = vand.u32 %v2450, 4294901760
  %v2452 = vsub.f32 %v2450, %v2451
  %v2453 = vand.u32 %v2452, 4294901760
  %2454 = vmatpush1.msra.mxu0 %v2453
  %v2455 = vand.u32 %v1578, 4294901760
  %v2456 = vsub.f32 %v1578, %v2455
  %v2457 = vand.u32 %v2456, 4294901760
  %v2458 = vsub.f32 %v2456, %v2457
  %v2459 = vand.u32 %v2458, 4294901760
  %2460 = vmatprep.subr.mxu0 %v2459
  %v2461 = vand.u32 %v1577, 4294901760
  %v2462 = vsub.f32 %v1577, %v2461
  %v2463 = vand.u32 %v2462, 4294901760
  %v2464 = vsub.f32 %v2462, %v2463
  %v2465 = vand.u32 %v2464, 4294901760
  %2466 = vmatpush1.msra.mxu0 %v2465
  %v2467 = vand.u32 %v1512, 4294901760
  %v2468 = vsub.f32 %v1512, %v2467
  %v2469 = vand.u32 %v2468, 4294901760
  %v2470 = vsub.f32 %v2468, %v2469
  %v2471 = vand.u32 %v2470, 4294901760
  %2472 = vmatprep.subr.mxu0 %v2471
  %v2473 = vand.u32 %v1511, 4294901760
  %v2474 = vsub.f32 %v1511, %v2473
  %v2475 = vand.u32 %v2474, 4294901760
  %v2476 = vsub.f32 %v2474, %v2475
  %v2477 = vand.u32 %v2476, 4294901760
  %2478 = vmatpush1.msra.mxu0 %v2477
  %v2479 = vand.u32 %v1594, 4294901760
  %v2480 = vsub.f32 %v1594, %v2479
  %v2481 = vand.u32 %v2480, 4294901760
  %v2482 = vsub.f32 %v2480, %v2481
  %v2483 = vand.u32 %v2482, 4294901760
  %2484 = vmatprep.subr.mxu0 %v2483
  %v2485 = vand.u32 %v1593, 4294901760
  %v2486 = vsub.f32 %v1593, %v2485
  %v2487 = vand.u32 %v2486, 4294901760
  %v2488 = vsub.f32 %v2486, %v2487
  %v2489 = vand.u32 %v2488, 4294901760
  %2490 = vmatpush1.msra.mxu0 %v2489
  %v2491 = vand.u32 %v1610, 4294901760
  %v2492 = vsub.f32 %v1610, %v2491
  %v2493 = vand.u32 %v2492, 4294901760
  %v2494 = vsub.f32 %v2492, %v2493
  %v2495 = vand.u32 %v2494, 4294901760
  %2496 = vmatprep.subr.mxu0 %v2495
  %v2497 = vand.u32 %v1609, 4294901760
  %v2498 = vsub.f32 %v1609, %v2497
  %v2499 = vand.u32 %v2498, 4294901760
  %v2500 = vsub.f32 %v2498, %v2499
  %v2501 = vand.u32 %v2500, 4294901760
  %2502 = vmatpush1.msra.mxu0 %v2501
  %v2503 = vand.u32 %v1626, 4294901760
  %v2504 = vsub.f32 %v1626, %v2503
  %v2505 = vand.u32 %v2504, 4294901760
  %v2506 = vsub.f32 %v2504, %v2505
  %v2507 = vand.u32 %v2506, 4294901760
  %2508 = vmatprep.subr.mxu0 %v2507
  %v2509 = vand.u32 %v1625, 4294901760
  %v2510 = vsub.f32 %v1625, %v2509
  %v2511 = vand.u32 %v2510, 4294901760
  %v2512 = vsub.f32 %v2510, %v2511
  %v2513 = vand.u32 %v2512, 4294901760
  %2514 = vmatpush1.msra.mxu0 %v2513
  %v2515 = vand.u32 %v1642, 4294901760
  %v2516 = vsub.f32 %v1642, %v2515
  %v2517 = vand.u32 %v2516, 4294901760
  %v2518 = vsub.f32 %v2516, %v2517
  %v2519 = vand.u32 %v2518, 4294901760
  %2520 = vmatprep.subr.mxu0 %v2519
  %v2521 = vand.u32 %v1641, 4294901760
  %v2522 = vsub.f32 %v1641, %v2521
  %v2523 = vand.u32 %v2522, 4294901760
  %v2524 = vsub.f32 %v2522, %v2523
  %v2525 = vand.u32 %v2524, 4294901760
  %2526 = vmatpush1.msra.mxu0 %v2525
  %2527 = vmatprep.subr.mxu0 0.0
  %2528 = vmatpush1.msra.mxu0 0.0
  %2529 = vmatprep.subr.mxu0 0.0
  %2530 = vmatpush1.msra.mxu0 0.0
  %2531 = vmatprep.subr.mxu0 0.0
  %2532 = vmatpush1.msra.mxu0 0.0
  %2533 = vmatprep.subr.mxu0 0.0
  %2534 = vmatpush1.msra.mxu0 0.0
  %2535 = vmatprep.subr.mxu0 0.0
  %2536 = vmatpush1.msra.mxu0 0.0
  %2537 = vmatprep.subr.mxu0 0.0
  %2538 = vmatpush1.msra.mxu0 0.0
  %2539 = vmatprep.subr.mxu0 0.0
  %2540 = vmatpush1.msra.mxu0 0.0
  %2541 = vmatprep.subr.mxu0 0.0
  %2542 = vmatpush1.msra.mxu0 0.0
  %2543 = vmatprep.subr.mxu0 0.0
  %2544 = vmatpush1.msra.mxu0 0.0
  %2545 = vmatprep.subr.mxu0 0.0
  %2546 = vmatpush1.msra.mxu0 0.0
  %2547 = vmatprep.subr.mxu0 0.0
  %2548 = vmatpush1.msra.mxu0 0.0
  %2549 = vmatprep.subr.mxu0 0.0
  %2550 = vmatpush1.msra.mxu0 0.0
  %2551 = vmatprep.subr.mxu0 0.0
  %2552 = vmatpush1.msra.mxu0 0.0
  %2553 = vmatprep.subr.mxu0 0.0
  %2554 = vmatpush1.msra.mxu0 0.0
  %2555 = vmatprep.subr.mxu0 0.0
  %2556 = vmatpush1.msra.mxu0 0.0
  %2557 = vmatprep.subr.mxu0 0.0
  %2558 = vmatpush1.msra.mxu0 0.0
  %2559 = vmatprep.subr.mxu0 0.0
  %2560 = vmatpush1.msra.mxu0 0.0
  %2561 = vmatprep.subr.mxu0 0.0
  %2562 = vmatpush1.msra.mxu0 0.0
  %2563 = vmatprep.subr.mxu0 0.0
  %2564 = vmatpush1.msra.mxu0 0.0
  %2565 = vmatprep.subr.mxu0 0.0
  %2566 = vmatpush1.msra.mxu0 0.0
  %2567 = vmatprep.subr.mxu0 0.0
  %2568 = vmatpush1.msra.mxu0 0.0
  %2569 = vmatprep.subr.mxu0 0.0
  %2570 = vmatpush1.msra.mxu0 0.0
  %2571 = vmatprep.subr.mxu0 0.0
  %2572 = vmatpush1.msra.mxu0 0.0
  %2573 = vmatprep.mubr.f32.mxu0 0.0
  %v2574 = vand.u32 %v1650, 4294901760
  %2575 = vmatmul.mubr.f32.gmra.mrb[0].mxu0 %v2574
  %v2576 = vpop.f32.mrb[0].mxu0
  %v2577 = vadd.f32 %v2415, %v2576
  %v2578 = vpop.f32.mrb[0].mxu0
  %v2579 = vadd.f32 %v2417, %v2578
  %2580 = vdwg.mxu0
  %v2581 = vand.u32 %v1530, 4294901760
  %v2582 = vsub.f32 %v1530, %v2581
  %2583 = vmatprep.subr.mxu0 %v2582
  %v2584 = vand.u32 %v1529, 4294901760
  %v2585 = vsub.f32 %v1529, %v2584
  %2586 = vmatpush1.msra.mxu0 %v2585
  %v2587 = vand.u32 %v1546, 4294901760
  %v2588 = vsub.f32 %v1546, %v2587
  %2589 = vmatprep.subr.mxu0 %v2588
  %v2590 = vand.u32 %v1545, 4294901760
  %v2591 = vsub.f32 %v1545, %v2590
  %2592 = vmatpush1.msra.mxu0 %v2591
  %v2593 = vand.u32 %v1562, 4294901760
  %v2594 = vsub.f32 %v1562, %v2593
  %2595 = vmatprep.subr.mxu0 %v2594
  %v2596 = vand.u32 %v1561, 4294901760
  %v2597 = vsub.f32 %v1561, %v2596
  %2598 = vmatpush1.msra.mxu0 %v2597
  %v2599 = vand.u32 %v1578, 4294901760
  %v2600 = vsub.f32 %v1578, %v2599
  %2601 = vmatprep.subr.mxu0 %v2600
  %v2602 = vand.u32 %v1577, 4294901760
  %v2603 = vsub.f32 %v1577, %v2602
  %2604 = vmatpush1.msra.mxu0 %v2603
  %v2605 = vand.u32 %v1512, 4294901760
  %v2606 = vsub.f32 %v1512, %v2605
  %2607 = vmatprep.subr.mxu0 %v2606
  %v2608 = vand.u32 %v1511, 4294901760
  %v2609 = vsub.f32 %v1511, %v2608
  %2610 = vmatpush1.msra.mxu0 %v2609
  %v2611 = vand.u32 %v1594, 4294901760
  %v2612 = vsub.f32 %v1594, %v2611
  %2613 = vmatprep.subr.mxu0 %v2612
  %v2614 = vand.u32 %v1593, 4294901760
  %v2615 = vsub.f32 %v1593, %v2614
  %2616 = vmatpush1.msra.mxu0 %v2615
  %v2617 = vand.u32 %v1610, 4294901760
  %v2618 = vsub.f32 %v1610, %v2617
  %2619 = vmatprep.subr.mxu0 %v2618
  %v2620 = vand.u32 %v1609, 4294901760
  %v2621 = vsub.f32 %v1609, %v2620
  %2622 = vmatpush1.msra.mxu0 %v2621
  %v2623 = vand.u32 %v1626, 4294901760
  %v2624 = vsub.f32 %v1626, %v2623
  %2625 = vmatprep.subr.mxu0 %v2624
  %v2626 = vand.u32 %v1625, 4294901760
  %v2627 = vsub.f32 %v1625, %v2626
  %2628 = vmatpush1.msra.mxu0 %v2627
  %v2629 = vand.u32 %v1642, 4294901760
  %v2630 = vsub.f32 %v1642, %v2629
  %2631 = vmatprep.subr.mxu0 %v2630
  %v2632 = vand.u32 %v1641, 4294901760
  %v2633 = vsub.f32 %v1641, %v2632
  %2634 = vmatpush1.msra.mxu0 %v2633
  %2635 = vmatprep.subr.mxu0 0.0
  %2636 = vmatpush1.msra.mxu0 0.0
  %2637 = vmatprep.subr.mxu0 0.0
  %2638 = vmatpush1.msra.mxu0 0.0
  %2639 = vmatprep.subr.mxu0 0.0
  %2640 = vmatpush1.msra.mxu0 0.0
  %2641 = vmatprep.subr.mxu0 0.0
  %2642 = vmatpush1.msra.mxu0 0.0
  %2643 = vmatprep.subr.mxu0 0.0
  %2644 = vmatpush1.msra.mxu0 0.0
  %2645 = vmatprep.subr.mxu0 0.0
  %2646 = vmatpush1.msra.mxu0 0.0
  %2647 = vmatprep.subr.mxu0 0.0
  %2648 = vmatpush1.msra.mxu0 0.0
  %2649 = vmatprep.subr.mxu0 0.0
  %2650 = vmatpush1.msra.mxu0 0.0
  %2651 = vmatprep.subr.mxu0 0.0
  %2652 = vmatpush1.msra.mxu0 0.0
  %2653 = vmatprep.subr.mxu0 0.0
  %2654 = vmatpush1.msra.mxu0 0.0
  %2655 = vmatprep.subr.mxu0 0.0
  %2656 = vmatpush1.msra.mxu0 0.0
  %2657 = vmatprep.subr.mxu0 0.0
  %2658 = vmatpush1.msra.mxu0 0.0
  %2659 = vmatprep.subr.mxu0 0.0
  %2660 = vmatpush1.msra.mxu0 0.0
  %2661 = vmatprep.subr.mxu0 0.0
  %2662 = vmatpush1.msra.mxu0 0.0
  %2663 = vmatprep.subr.mxu0 0.0
  %2664 = vmatpush1.msra.mxu0 0.0
  %2665 = vmatprep.subr.mxu0 0.0
  %2666 = vmatpush1.msra.mxu0 0.0
  %2667 = vmatprep.subr.mxu0 0.0
  %2668 = vmatpush1.msra.mxu0 0.0
  %2669 = vmatprep.subr.mxu0 0.0
  %2670 = vmatpush1.msra.mxu0 0.0
  %2671 = vmatprep.subr.mxu0 0.0
  %2672 = vmatpush1.msra.mxu0 0.0
  %2673 = vmatprep.subr.mxu0 0.0
  %2674 = vmatpush1.msra.mxu0 0.0
  %2675 = vmatprep.subr.mxu0 0.0
  %2676 = vmatpush1.msra.mxu0 0.0
  %2677 = vmatprep.subr.mxu0 0.0
  %2678 = vmatpush1.msra.mxu0 0.0
  %2679 = vmatprep.subr.mxu0 0.0
  %2680 = vmatpush1.msra.mxu0 0.0
  %2681 = vmatprep.mubr.f32.mxu0 0.0
  %v2682 = vand.u32 %v1650, 4294901760
  %v2683 = vsub.f32 %v1650, %v2682
  %2684 = vmatmul.mubr.f32.gmra.mrb[0].mxu0 %v2683
  %v2685 = vpop.f32.mrb[0].mxu0
  %v2686 = vadd.f32 %v2577, %v2685
  %v2687 = vpop.f32.mrb[0].mxu0
  %v2688 = vadd.f32 %v2579, %v2687
  %2689 = vdwg.mxu0
  %v2690 = vand.u32 %v1530, 4294901760
  %2691 = vmatprep.subr.mxu0 %v2690
  %v2692 = vand.u32 %v1529, 4294901760
  %2693 = vmatpush1.msra.mxu0 %v2692
  %v2694 = vand.u32 %v1546, 4294901760
  %2695 = vmatprep.subr.mxu0 %v2694
  %v2696 = vand.u32 %v1545, 4294901760
  %2697 = vmatpush1.msra.mxu0 %v2696
  %v2698 = vand.u32 %v1562, 4294901760
  %2699 = vmatprep.subr.mxu0 %v2698
  %v2700 = vand.u32 %v1561, 4294901760
  %2701 = vmatpush1.msra.mxu0 %v2700
  %v2702 = vand.u32 %v1578, 4294901760
  %2703 = vmatprep.subr.mxu0 %v2702
  %v2704 = vand.u32 %v1577, 4294901760
  %2705 = vmatpush1.msra.mxu0 %v2704
  %v2706 = vand.u32 %v1512, 4294901760
  %2707 = vmatprep.subr.mxu0 %v2706
  %v2708 = vand.u32 %v1511, 4294901760
  %2709 = vmatpush1.msra.mxu0 %v2708
  %v2710 = vand.u32 %v1594, 4294901760
  %2711 = vmatprep.subr.mxu0 %v2710
  %v2712 = vand.u32 %v1593, 4294901760
  %2713 = vmatpush1.msra.mxu0 %v2712
  %v2714 = vand.u32 %v1610, 4294901760
  %2715 = vmatprep.subr.mxu0 %v2714
  %v2716 = vand.u32 %v1609, 4294901760
  %2717 = vmatpush1.msra.mxu0 %v2716
  %v2718 = vand.u32 %v1626, 4294901760
  %2719 = vmatprep.subr.mxu0 %v2718
  %v2720 = vand.u32 %v1625, 4294901760
  %2721 = vmatpush1.msra.mxu0 %v2720
  %v2722 = vand.u32 %v1642, 4294901760
  %2723 = vmatprep.subr.mxu0 %v2722
  %v2724 = vand.u32 %v1641, 4294901760
  %2725 = vmatpush1.msra.mxu0 %v2724
  %2726 = vmatprep.subr.mxu0 0.0
  %2727 = vmatpush1.msra.mxu0 0.0
  %2728 = vmatprep.subr.mxu0 0.0
  %2729 = vmatpush1.msra.mxu0 0.0
  %2730 = vmatprep.subr.mxu0 0.0
  %2731 = vmatpush1.msra.mxu0 0.0
  %2732 = vmatprep.subr.mxu0 0.0
  %2733 = vmatpush1.msra.mxu0 0.0
  %2734 = vmatprep.subr.mxu0 0.0
  %2735 = vmatpush1.msra.mxu0 0.0
  %2736 = vmatprep.subr.mxu0 0.0
  %2737 = vmatpush1.msra.mxu0 0.0
  %2738 = vmatprep.subr.mxu0 0.0
  %2739 = vmatpush1.msra.mxu0 0.0
  %2740 = vmatprep.subr.mxu0 0.0
  %2741 = vmatpush1.msra.mxu0 0.0
  %2742 = vmatprep.subr.mxu0 0.0
  %2743 = vmatpush1.msra.mxu0 0.0
  %2744 = vmatprep.subr.mxu0 0.0
  %2745 = vmatpush1.msra.mxu0 0.0
  %2746 = vmatprep.subr.mxu0 0.0
  %2747 = vmatpush1.msra.mxu0 0.0
  %2748 = vmatprep.subr.mxu0 0.0
  %2749 = vmatpush1.msra.mxu0 0.0
  %2750 = vmatprep.subr.mxu0 0.0
  %2751 = vmatpush1.msra.mxu0 0.0
  %2752 = vmatprep.subr.mxu0 0.0
  %2753 = vmatpush1.msra.mxu0 0.0
  %2754 = vmatprep.subr.mxu0 0.0
  %2755 = vmatpush1.msra.mxu0 0.0
  %2756 = vmatprep.subr.mxu0 0.0
  %2757 = vmatpush1.msra.mxu0 0.0
  %2758 = vmatprep.subr.mxu0 0.0
  %2759 = vmatpush1.msra.mxu0 0.0
  %2760 = vmatprep.subr.mxu0 0.0
  %2761 = vmatpush1.msra.mxu0 0.0
  %2762 = vmatprep.subr.mxu0 0.0
  %2763 = vmatpush1.msra.mxu0 0.0
  %2764 = vmatprep.subr.mxu0 0.0
  %2765 = vmatpush1.msra.mxu0 0.0
  %2766 = vmatprep.subr.mxu0 0.0
  %2767 = vmatpush1.msra.mxu0 0.0
  %2768 = vmatprep.subr.mxu0 0.0
  %2769 = vmatpush1.msra.mxu0 0.0
  %2770 = vmatprep.subr.mxu0 0.0
  %2771 = vmatpush1.msra.mxu0 0.0
  %2772 = vmatprep.mubr.f32.mxu0 0.0
  %v2773 = vand.u32 %v1650, 4294901760
  %v2774 = vsub.f32 %v1650, %v2773
  %v2775 = vand.u32 %v2774, 4294901760
  %2776 = vmatmul.mubr.f32.gmra.mrb[0].mxu0 %v2775
  %v2777 = vpop.f32.mrb[0].mxu0
  %v2778 = vadd.f32 %v2686, %v2777
  %v2779 = vpop.f32.mrb[0].mxu0
  %v2780 = vadd.f32 %v2688, %v2779
  %2781 = vdwg.mxu0
  %v2782 = vand.u32 %v1530, 4294901760
  %v2783 = vsub.f32 %v1530, %v2782
  %v2784 = vand.u32 %v2783, 4294901760
  %2785 = vmatprep.subr.mxu0 %v2784
  %v2786 = vand.u32 %v1529, 4294901760
  %v2787 = vsub.f32 %v1529, %v2786
  %v2788 = vand.u32 %v2787, 4294901760
  %2789 = vmatpush1.msra.mxu0 %v2788
  %v2790 = vand.u32 %v1546, 4294901760
  %v2791 = vsub.f32 %v1546, %v2790
  %v2792 = vand.u32 %v2791, 4294901760
  %2793 = vmatprep.subr.mxu0 %v2792
  %v2794 = vand.u32 %v1545, 4294901760
  %v2795 = vsub.f32 %v1545, %v2794
  %v2796 = vand.u32 %v2795, 4294901760
  %2797 = vmatpush1.msra.mxu0 %v2796
  %v2798 = vand.u32 %v1562, 4294901760
  %v2799 = vsub.f32 %v1562, %v2798
  %v2800 = vand.u32 %v2799, 4294901760
  %2801 = vmatprep.subr.mxu0 %v2800
  %v2802 = vand.u32 %v1561, 4294901760
  %v2803 = vsub.f32 %v1561, %v2802
  %v2804 = vand.u32 %v2803, 4294901760
  %2805 = vmatpush1.msra.mxu0 %v2804
  %v2806 = vand.u32 %v1578, 4294901760
  %v2807 = vsub.f32 %v1578, %v2806
  %v2808 = vand.u32 %v2807, 4294901760
  %2809 = vmatprep.subr.mxu0 %v2808
  %v2810 = vand.u32 %v1577, 4294901760
  %v2811 = vsub.f32 %v1577, %v2810
  %v2812 = vand.u32 %v2811, 4294901760
  %2813 = vmatpush1.msra.mxu0 %v2812
  %v2814 = vand.u32 %v1512, 4294901760
  %v2815 = vsub.f32 %v1512, %v2814
  %v2816 = vand.u32 %v2815, 4294901760
  %2817 = vmatprep.subr.mxu0 %v2816
  %v2818 = vand.u32 %v1511, 4294901760
  %v2819 = vsub.f32 %v1511, %v2818
  %v2820 = vand.u32 %v2819, 4294901760
  %2821 = vmatpush1.msra.mxu0 %v2820
  %v2822 = vand.u32 %v1594, 4294901760
  %v2823 = vsub.f32 %v1594, %v2822
  %v2824 = vand.u32 %v2823, 4294901760
  %2825 = vmatprep.subr.mxu0 %v2824
  %v2826 = vand.u32 %v1593, 4294901760
  %v2827 = vsub.f32 %v1593, %v2826
  %v2828 = vand.u32 %v2827, 4294901760
  %2829 = vmatpush1.msra.mxu0 %v2828
  %v2830 = vand.u32 %v1610, 4294901760
  %v2831 = vsub.f32 %v1610, %v2830
  %v2832 = vand.u32 %v2831, 4294901760
  %2833 = vmatprep.subr.mxu0 %v2832
  %v2834 = vand.u32 %v1609, 4294901760
  %v2835 = vsub.f32 %v1609, %v2834
  %v2836 = vand.u32 %v2835, 4294901760
  %2837 = vmatpush1.msra.mxu0 %v2836
  %v2838 = vand.u32 %v1626, 4294901760
  %v2839 = vsub.f32 %v1626, %v2838
  %v2840 = vand.u32 %v2839, 4294901760
  %2841 = vmatprep.subr.mxu0 %v2840
  %v2842 = vand.u32 %v1625, 4294901760
  %v2843 = vsub.f32 %v1625, %v2842
  %v2844 = vand.u32 %v2843, 4294901760
  %2845 = vmatpush1.msra.mxu0 %v2844
  %v2846 = vand.u32 %v1642, 4294901760
  %v2847 = vsub.f32 %v1642, %v2846
  %v2848 = vand.u32 %v2847, 4294901760
  %2849 = vmatprep.subr.mxu0 %v2848
  %v2850 = vand.u32 %v1641, 4294901760
  %v2851 = vsub.f32 %v1641, %v2850
  %v2852 = vand.u32 %v2851, 4294901760
  %2853 = vmatpush1.msra.mxu0 %v2852
  %2854 = vmatprep.subr.mxu0 0.0
  %2855 = vmatpush1.msra.mxu0 0.0
  %2856 = vmatprep.subr.mxu0 0.0
  %2857 = vmatpush1.msra.mxu0 0.0
  %2858 = vmatprep.subr.mxu0 0.0
  %2859 = vmatpush1.msra.mxu0 0.0
  %2860 = vmatprep.subr.mxu0 0.0
  %2861 = vmatpush1.msra.mxu0 0.0
  %2862 = vmatprep.subr.mxu0 0.0
  %2863 = vmatpush1.msra.mxu0 0.0
  %2864 = vmatprep.subr.mxu0 0.0
  %2865 = vmatpush1.msra.mxu0 0.0
  %2866 = vmatprep.subr.mxu0 0.0
  %2867 = vmatpush1.msra.mxu0 0.0
  %2868 = vmatprep.subr.mxu0 0.0
  %2869 = vmatpush1.msra.mxu0 0.0
  %2870 = vmatprep.subr.mxu0 0.0
  %2871 = vmatpush1.msra.mxu0 0.0
  %2872 = vmatprep.subr.mxu0 0.0
  %2873 = vmatpush1.msra.mxu0 0.0
  %2874 = vmatprep.subr.mxu0 0.0
  %2875 = vmatpush1.msra.mxu0 0.0
  %2876 = vmatprep.subr.mxu0 0.0
  %2877 = vmatpush1.msra.mxu0 0.0
  %2878 = vmatprep.subr.mxu0 0.0
  %2879 = vmatpush1.msra.mxu0 0.0
  %2880 = vmatprep.subr.mxu0 0.0
  %2881 = vmatpush1.msra.mxu0 0.0
  %2882 = vmatprep.subr.mxu0 0.0
  %2883 = vmatpush1.msra.mxu0 0.0
  %2884 = vmatprep.subr.mxu0 0.0
  %2885 = vmatpush1.msra.mxu0 0.0
  %2886 = vmatprep.subr.mxu0 0.0
  %2887 = vmatpush1.msra.mxu0 0.0
  %2888 = vmatprep.subr.mxu0 0.0
  %2889 = vmatpush1.msra.mxu0 0.0
  %2890 = vmatprep.subr.mxu0 0.0
  %2891 = vmatpush1.msra.mxu0 0.0
  %2892 = vmatprep.subr.mxu0 0.0
  %2893 = vmatpush1.msra.mxu0 0.0
  %2894 = vmatprep.subr.mxu0 0.0
  %2895 = vmatpush1.msra.mxu0 0.0
  %2896 = vmatprep.subr.mxu0 0.0
  %2897 = vmatpush1.msra.mxu0 0.0
  %2898 = vmatprep.subr.mxu0 0.0
  %2899 = vmatpush1.msra.mxu0 0.0
  %2900 = vmatprep.mubr.f32.mxu0 0.0
  %v2901 = vand.u32 %v1650, 4294901760
  %2902 = vmatmul.mubr.f32.gmra.mrb[0].mxu0 %v2901
  %v2903 = vpop.f32.mrb[0].mxu0
  %v2904 = vadd.f32 %v2778, %v2903
  %v2905 = vpop.f32.mrb[0].mxu0
  %v2906 = vadd.f32 %v2780, %v2905
  %2907 = vdwg.mxu0
  %v2908 = vand.u32 %v1530, 4294901760
  %2909 = vmatprep.subr.mxu0 %v2908
  %v2910 = vand.u32 %v1529, 4294901760
  %2911 = vmatpush1.msra.mxu0 %v2910
  %v2912 = vand.u32 %v1546, 4294901760
  %2913 = vmatprep.subr.mxu0 %v2912
  %v2914 = vand.u32 %v1545, 4294901760
  %2915 = vmatpush1.msra.mxu0 %v2914
  %v2916 = vand.u32 %v1562, 4294901760
  %2917 = vmatprep.subr.mxu0 %v2916
  %v2918 = vand.u32 %v1561, 4294901760
  %2919 = vmatpush1.msra.mxu0 %v2918
  %v2920 = vand.u32 %v1578, 4294901760
  %2921 = vmatprep.subr.mxu0 %v2920
  %v2922 = vand.u32 %v1577, 4294901760
  %2923 = vmatpush1.msra.mxu0 %v2922
  %v2924 = vand.u32 %v1512, 4294901760
  %2925 = vmatprep.subr.mxu0 %v2924
  %v2926 = vand.u32 %v1511, 4294901760
  %2927 = vmatpush1.msra.mxu0 %v2926
  %v2928 = vand.u32 %v1594, 4294901760
  %2929 = vmatprep.subr.mxu0 %v2928
  %v2930 = vand.u32 %v1593, 4294901760
  %2931 = vmatpush1.msra.mxu0 %v2930
  %v2932 = vand.u32 %v1610, 4294901760
  %2933 = vmatprep.subr.mxu0 %v2932
  %v2934 = vand.u32 %v1609, 4294901760
  %2935 = vmatpush1.msra.mxu0 %v2934
  %v2936 = vand.u32 %v1626, 4294901760
  %2937 = vmatprep.subr.mxu0 %v2936
  %v2938 = vand.u32 %v1625, 4294901760
  %2939 = vmatpush1.msra.mxu0 %v2938
  %v2940 = vand.u32 %v1642, 4294901760
  %2941 = vmatprep.subr.mxu0 %v2940
  %v2942 = vand.u32 %v1641, 4294901760
  %2943 = vmatpush1.msra.mxu0 %v2942
  %2944 = vmatprep.subr.mxu0 0.0
  %2945 = vmatpush1.msra.mxu0 0.0
  %2946 = vmatprep.subr.mxu0 0.0
  %2947 = vmatpush1.msra.mxu0 0.0
  %2948 = vmatprep.subr.mxu0 0.0
  %2949 = vmatpush1.msra.mxu0 0.0
  %2950 = vmatprep.subr.mxu0 0.0
  %2951 = vmatpush1.msra.mxu0 0.0
  %2952 = vmatprep.subr.mxu0 0.0
  %2953 = vmatpush1.msra.mxu0 0.0
  %2954 = vmatprep.subr.mxu0 0.0
  %2955 = vmatpush1.msra.mxu0 0.0
  %2956 = vmatprep.subr.mxu0 0.0
  %2957 = vmatpush1.msra.mxu0 0.0
  %2958 = vmatprep.subr.mxu0 0.0
  %2959 = vmatpush1.msra.mxu0 0.0
  %2960 = vmatprep.subr.mxu0 0.0
  %2961 = vmatpush1.msra.mxu0 0.0
  %2962 = vmatprep.subr.mxu0 0.0
  %2963 = vmatpush1.msra.mxu0 0.0
  %2964 = vmatprep.subr.mxu0 0.0
  %2965 = vmatpush1.msra.mxu0 0.0
  %2966 = vmatprep.subr.mxu0 0.0
  %2967 = vmatpush1.msra.mxu0 0.0
  %2968 = vmatprep.subr.mxu0 0.0
  %2969 = vmatpush1.msra.mxu0 0.0
  %2970 = vmatprep.subr.mxu0 0.0
  %2971 = vmatpush1.msra.mxu0 0.0
  %2972 = vmatprep.subr.mxu0 0.0
  %2973 = vmatpush1.msra.mxu0 0.0
  %2974 = vmatprep.subr.mxu0 0.0
  %2975 = vmatpush1.msra.mxu0 0.0
  %2976 = vmatprep.subr.mxu0 0.0
  %2977 = vmatpush1.msra.mxu0 0.0
  %2978 = vmatprep.subr.mxu0 0.0
  %2979 = vmatpush1.msra.mxu0 0.0
  %2980 = vmatprep.subr.mxu0 0.0
  %2981 = vmatpush1.msra.mxu0 0.0
  %2982 = vmatprep.subr.mxu0 0.0
  %2983 = vmatpush1.msra.mxu0 0.0
  %2984 = vmatprep.subr.mxu0 0.0
  %2985 = vmatpush1.msra.mxu0 0.0
  %2986 = vmatprep.subr.mxu0 0.0
  %2987 = vmatpush1.msra.mxu0 0.0
  %2988 = vmatprep.subr.mxu0 0.0
  %2989 = vmatpush1.msra.mxu0 0.0
  %2990 = vmatprep.mubr.f32.mxu0 0.0
  %v2991 = vand.u32 %v1650, 4294901760
  %2992 = vmatmul.mubr.f32.gmra.mrb[0].mxu0 %v2991
  %v2993 = vpop.f32.mrb[0].mxu0
  %v2994 = vadd.f32 %v2904, %v2993
  %v2995 = vpop.f32.mrb[0].mxu0
  %v2996 = vadd.f32 %v2906, %v2995
  %2997 = vdwg.mxu0
  %2998 = vst [vmem:[%s6] sm:$0xff] %v2321
  %2999 = vst [vmem:[%s6 + $0x8] sm:$0xff] %v2323
  %3000 = vst [vmem:[%s6 + $0x10] sm:$0xff] %v2994
  %3001 = vst [vmem:[%s6 + $0x18] sm:$0xff] %v2996
  // Predicated region
  $region22: #{_run.1} parent=0 // pred_check
    _
  $region23: #{_run.1} parent=0 // pred_check_branch
    %3003 = sbr.rel (0) target = $region25
  $region24: #{_run.1} parent=0 // pred_region
    _
  $region25: #{_run.1} parent=0 // pred_fallthru
    _
  // Predicated region
  $region26: #{_run.1} parent=0 // pred_check
    _
  $region27: #{_run.1} parent=0 // pred_check_branch
    %3005 = sbr.rel (0) target = $region29
  $region28: #{_run.1} parent=0 // pred_region
    _
  $region29: #{_run.1} parent=0 // pred_fallthru
    _
  // Predicated region
  $region30: #{_run.1} parent=0 // pred_check
    _
  $region31: #{_run.1} parent=0 // pred_check_branch
    %3007 = sbr.rel (0) target = $region33
  $region32: #{_run.1} parent=0 // pred_region
    _
  $region33: #{_run.1} parent=0 // pred_fallthru
    _
  // Predicated region
  $region34: #{_run.1} parent=0 // pred_check
    _
  $region35: #{_run.1} parent=0 // pred_check_branch
    %3009 = sbr.rel (0) target = $region37
  $region36: #{_run.1} parent=0 // pred_region
    _
  $region37: #{_run.1} parent=0 // pred_fallthru
    _

</llo_original>
